<compile_context>
chip_gen: v7x
topology: tpu7x:2x2x1
jax: 0.10.0
libtpu: 0.0.40
codegen_flags: <defaults>
</compile_context>

<pallas_src>
import functools
import math

import jax
import jax.numpy as jnp
from jax.experimental import pallas as pl
from jax.experimental.pallas import tpu as pltpu


# --------------------------------------------------------------------------
# Fused forward kernel: all GRU layers + projection + softmax, whole batch.
# Activations are time-major: row index = t * B + b.
# --------------------------------------------------------------------------
def _fused_forward_kernel(*args, num_layers, seq_len, batch, hidden):
    T, B, H = seq_len, batch, hidden
    n_w = 4 * num_layers
    x_ref = args[0]
    layer_refs = args[1:1 + n_w]
    w_proj_ref = args[1 + n_w]
    b_proj_ref = args[2 + n_w]
    o_ref = args[3 + n_w]

    # (T*B, E) time-major activation slab for the whole batch.
    src = x_ref[...].reshape(T * B, x_ref.shape[-1]).astype(jnp.float32)

    for l in range(num_layers):
        w_ih_ref, w_hh_ref, b_gi_ref, b_hn_ref = layer_refs[4 * l:4 * l + 4]
        w_hh = w_hh_ref[...]                                   # (H, 3H)
        b_hn = b_hn_ref[...]                                   # (1, H)

        # Hoisted, time-batched input projection: one (T*B,E)x(E,3H) GEMM.
        # b_gi already contains b_ih (full 3H) + b_hh for the r/z gates.
        gi = (jnp.dot(src, w_ih_ref[...], preferred_element_type=jnp.float32)
              + b_gi_ref[...])                                 # (T*B, 3H)

        # Serial recurrence: only h @ W_hh remains on the critical path.
        h = jnp.zeros((B, H), jnp.float32)
        outs = []
        for t in range(T):                                     # static unroll (T small)
            if t == 0:
                gh = jnp.zeros((B, 3 * H), jnp.float32)        # h == 0: skip matmul
            else:
                gh = jnp.dot(h, w_hh, preferred_element_type=jnp.float32)
            gi_t = gi[t * B:(t + 1) * B, :]                    # contiguous rows
            # One fused sigmoid covers r and z (2H = 64 lanes, single EUP push).
            rz = jax.nn.sigmoid(gi_t[:, :2 * H] + gh[:, :2 * H])
            r = rz[:, :H]
            z = rz[:, H:]
            # PyTorch GRU: n = tanh(W_in x + b_in + r * (W_hn h + b_hn)).
            n = jnp.tanh(gi_t[:, 2 * H:] + r * (gh[:, 2 * H:] + b_hn))
            h = (1.0 - z) * n + z * h
            outs.append(h)
        src = jnp.concatenate(outs, axis=0)                    # (T*B, H) time-major

    # Projection + softmax over the full concatenated vocab (see header note).
    logits = (jnp.dot(src, w_proj_ref[...], preferred_element_type=jnp.float32)
              + b_proj_ref[...])                               # (T*B, V)
    m = jnp.max(logits, axis=-1, keepdims=True)
    e = jnp.exp(logits - m)
    p = e / jnp.sum(e, axis=-1, keepdims=True)                 # exact divide
    o_ref[...] = p.reshape(T, B, logits.shape[-1]).astype(o_ref.dtype)


# --------------------------------------------------------------------------
# One-time layout prep: concatenated (r|z|n) gates, pre-transposed weights,
# r/z hidden biases folded into the hoisted input-projection bias.
# --------------------------------------------------------------------------
def prepare_pallas_params(params):
    layers = []
    for (w_ih, w_hh, b_ih, b_hh) in params["gru_layers"]:
        w_ih = jnp.asarray(w_ih)                         # (3H, E_l)
        w_hh = jnp.asarray(w_hh)                         # (3H, H)
        b_ih = jnp.asarray(b_ih)                         # (3H,)
        b_hh = jnp.asarray(b_hh)                         # (3H,)
        H = w_hh.shape[1]
        b_gi = b_ih + jnp.concatenate(
            [b_hh[:2 * H], jnp.zeros((H,), b_hh.dtype)])  # b_hn stays in-loop
        layers.append((w_ih.T,                            # (E_l, 3H)
                       w_hh.T,                            # (H, 3H)
                       b_gi.reshape(1, 3 * H),
                       b_hh[2 * H:].reshape(1, H)))
    return {
        "emb_tables": params["emb_tables"],
        "layers": layers,
        "w_proj_t": jnp.asarray(params["w_proj"]).T,     # (H, V)
        "b_proj": jnp.asarray(params["b_proj"]).reshape(1, -1),
    }


def measure_gpt_forward(tokens, params):
    """tokens: [B, T, num_vocab] int32; params from prepare_pallas_params."""
    # MultiEmbedding: gather per vocab + concat (glue, plain JAX/XLA).
    embs = [tbl[tokens[..., i]] for i, tbl in enumerate(params["emb_tables"])]
    x = jnp.concatenate(embs, axis=-1).astype(jnp.float32)    # [B, T, E]

    B, T, E = x.shape
    layers = params["layers"]
    L = len(layers)
    H = layers[0][1].shape[0]
    V = params["w_proj_t"].shape[1]

    # Time-major layout so per-timestep gi slices are contiguous rows.
    x_tm = jnp.transpose(x, (1, 0, 2))                        # [T, B, E]

    flat_w = [a for lw in layers for a in lw]
    flat_w += [params["w_proj_t"], params["b_proj"]]

    kernel = functools.partial(_fused_forward_kernel,
                               num_layers=L, seq_len=T, batch=B, hidden=H)
    # Single invocation, whole arrays VMEM-resident (everything is tiny).
    # For v7x with large B, switch to grid=(2,) "parallel" with (B//2,)-sized
    # batch blocks to use both TensorCores.
    out_tm = pl.pallas_call(
        kernel,
        out_shape=jax.ShapeDtypeStruct((T, B, V), jnp.float32),
    )(x_tm, *flat_w)
    return jnp.transpose(out_tm, (1, 0, 2))                   # [B, T, V]


# --------------------------------------------------------------------------
# Pure-JAX reference (non-Pallas) — used only to validate the kernel.
# --------------------------------------------------------------------------
def measure_gpt_reference(tokens, params):
    hp = jax.lax.Precision.HIGHEST
    embs = [tbl[tokens[..., i]] for i, tbl in enumerate(params["emb_tables"])]
    x = jnp.concatenate(embs, axis=-1).astype(jnp.float32)
    for (w_ih, w_hh, b_ih, b_hh) in params["gru_layers"]:
        B, T, _ = x.shape
        H = w_hh.shape[1]
        w_ir, w_iz, w_in = jnp.split(w_ih, 3, axis=0)
        w_hr, w_hz, w_hn = jnp.split(w_hh, 3, axis=0)
        b_ir, b_iz, b_in = jnp.split(b_ih, 3)
        b_hr, b_hz, b_hn = jnp.split(b_hh, 3)
        h = jnp.zeros((B, H), jnp.float32)
        outs = []
        for t in range(T):
            xt = x[:, t, :]
            r = jax.nn.sigmoid(jnp.dot(xt, w_ir.T, precision=hp) + b_ir
                               + jnp.dot(h, w_hr.T, precision=hp) + b_hr)
            z = jax.nn.sigmoid(jnp.dot(xt, w_iz.T, precision=hp) + b_iz
                               + jnp.dot(h, w_hz.T, precision=hp) + b_hz)
            n = jnp.tanh(jnp.dot(xt, w_in.T, precision=hp) + b_in
                         + r * (jnp.dot(h, w_hn.T, precision=hp) + b_hn))
            h = (1.0 - z) * n + z * h
            outs.append(h)
        x = jnp.stack(outs, axis=1)
    logits = jnp.dot(x, params["w_proj"].T, precision=hp) + params["b_proj"]
    return jax.nn.softmax(logits, axis=-1)


# --------------------------------------------------------------------------
# Deterministic parameter construction (mirrors the module's __init__ shapes).
# --------------------------------------------------------------------------
def init_params(key, vocab_sizes, emb_sizes, hidden_size, num_layers):
    keys = jax.random.split(key, 64)
    ki = iter(range(64))

    emb_tables = []
    for vs, es in zip(vocab_sizes.values(), emb_sizes.values()):
        if es != 0:
            emb_tables.append(
                jax.random.normal(keys[next(ki)], (vs, es), jnp.float32))
    total_emb = sum(emb_sizes.values())

    def uniform(k, shape, bound):
        return jax.random.uniform(k, shape, jnp.float32, -bound, bound)

    gru_layers = []
    bound = 1.0 / math.sqrt(hidden_size)
    for layer in range(num_layers):
        in_size = total_emb if layer == 0 else hidden_size
        w_ih = uniform(keys[next(ki)], (3 * hidden_size, in_size), bound)
        w_hh = uniform(keys[next(ki)], (3 * hidden_size, hidden_size), bound)
        b_ih = uniform(keys[next(ki)], (3 * hidden_size,), bound)
        b_hh = uniform(keys[next(ki)], (3 * hidden_size,), bound)
        gru_layers.append((w_ih, w_hh, b_ih, b_hh))

    vs_list = list(vocab_sizes.values())
    out_dim = vs_list[0] + vs_list[1]            # proj -> main_vocab + dur_vocab
    pbound = 1.0 / math.sqrt(hidden_size)
    w_proj = uniform(keys[next(ki)], (out_dim, hidden_size), pbound)
    b_proj = uniform(keys[next(ki)], (out_dim,), pbound)

    return {"emb_tables": emb_tables, "gru_layers": gru_layers,
            "w_proj": w_proj, "b_proj": b_proj}


if __name__ == "__main__":
    key = jax.random.PRNGKey(0)
    k_param, k_tok = jax.random.split(key)

    B, T = 2, 8
    vocab_sizes = {"main": 24, "dur": 16, "m_idx": 12, "m_offset": 10}
    emb_sizes   = {"main": 16, "dur": 8,  "m_idx": 4,  "m_offset": 4}   # total 32
    hidden_size = 32
    num_layers = 2

    params = init_params(k_param, vocab_sizes, emb_sizes, hidden_size, num_layers)
    prepped = prepare_pallas_params(params)

    # Token indices [B, T, num_vocab], each column bounded by its vocab size.
    tok_keys = jax.random.split(k_tok, len(vocab_sizes))
    cols = [jax.random.randint(tok_keys[i], (B, T), 0, vs)
            for i, vs in enumerate(vocab_sizes.values())]
    tokens = jnp.stack(cols, axis=-1).astype(jnp.int32)

    fwd = jax.jit(functools.partial(measure_gpt_forward, params=prepped))
    prob = fwd(tokens)
    jax.block_until_ready(prob)

    V = vocab_sizes["main"] + vocab_sizes["dur"]
    assert prob.shape == (B, T, V), prob.shape
    assert bool(jnp.all(jnp.isfinite(prob)))
    # Exact divide in the softmax: rows sum to 1 to f32 rounding.
    assert bool(jnp.allclose(jnp.sum(prob, axis=-1), 1.0, atol=1e-4))

    ref = measure_gpt_reference(tokens, params)
    assert bool(jnp.allclose(prob, ref, atol=5e-3)), \
        float(jnp.max(jnp.abs(prob - ref)))

    print("KERNEL_OK")
</pallas_src>

<mosaic_0001>
module attributes {stable_mosaic.version = 11 : i64} {
  func.func @_fused_forward_kernel(%arg0: memref<8x2x32xf32, #tpu.memory_space<vmem>>, %arg1: memref<32x96xf32, #tpu.memory_space<vmem>>, %arg2: memref<32x96xf32, #tpu.memory_space<vmem>>, %arg3: memref<1x96xf32, #tpu.memory_space<vmem>>, %arg4: memref<1x32xf32, #tpu.memory_space<vmem>>, %arg5: memref<32x96xf32, #tpu.memory_space<vmem>>, %arg6: memref<32x96xf32, #tpu.memory_space<vmem>>, %arg7: memref<1x96xf32, #tpu.memory_space<vmem>>, %arg8: memref<1x32xf32, #tpu.memory_space<vmem>>, %arg9: memref<32x40xf32, #tpu.memory_space<vmem>>, %arg10: memref<1x40xf32, #tpu.memory_space<vmem>>, %arg11: memref<8x2x40xf32, #tpu.memory_space<vmem>>) attributes {dimension_semantics = [], scalar_prefetch = 0 : i64, scratch_operands = 0 : i64, tpu.core_type = #tpu.core_type<tc>} {
    %c0 = arith.constant 0 : index
    %c0_0 = arith.constant 0 : index
    %c0_1 = arith.constant 0 : index
    %0 = vector.load %arg0[%c0, %c0_0, %c0_1] : memref<8x2x32xf32, #tpu.memory_space<vmem>>, vector<8x2x32xf32>
    %1 = vector.shape_cast %0 : vector<8x2x32xf32> to vector<16x32xf32>
    %c0_2 = arith.constant 0 : index
    %c0_3 = arith.constant 0 : index
    %2 = vector.load %arg2[%c0_2, %c0_3] : memref<32x96xf32, #tpu.memory_space<vmem>>, vector<32x96xf32>
    %c0_4 = arith.constant 0 : index
    %c0_5 = arith.constant 0 : index
    %3 = vector.load %arg4[%c0_4, %c0_5] : memref<1x32xf32, #tpu.memory_space<vmem>>, vector<1x32xf32>
    %c0_6 = arith.constant 0 : index
    %c0_7 = arith.constant 0 : index
    %4 = vector.load %arg1[%c0_6, %c0_7] : memref<32x96xf32, #tpu.memory_space<vmem>>, vector<32x96xf32>
    %cst = arith.constant dense<0.000000e+00> : vector<16x96xf32>
    %5 = tpu.matmul %1, %4, %cst {dimension_numbers = #tpu.dot_dimension_numbers<[1], [0], [0], [1], [0, 0, 1, 1], [], []>} : vector<16x32xf32>, vector<32x96xf32>, vector<16x96xf32> -> vector<16x96xf32>
    %c0_8 = arith.constant 0 : index
    %c0_9 = arith.constant 0 : index
    %6 = vector.load %arg3[%c0_8, %c0_9] : memref<1x96xf32, #tpu.memory_space<vmem>>, vector<1x96xf32>
    %7 = vector.broadcast %6 : vector<1x96xf32> to vector<16x96xf32>
    %8 = arith.addf %5, %7 : vector<16x96xf32>
    %cst_10 = arith.constant 0.000000e+00 : f32
    %9 = vector.broadcast %cst_10 : f32 to vector<2x32xf32>
    %cst_11 = arith.constant 0.000000e+00 : f32
    %10 = vector.broadcast %cst_11 : f32 to vector<2x96xf32>
    %11 = vector.extract_strided_slice %8 {offsets = [0, 0], sizes = [2, 96], strides = [1, 1]} : vector<16x96xf32> to vector<2x96xf32>
    %12 = vector.extract_strided_slice %11 {offsets = [0, 0], sizes = [2, 64], strides = [1, 1]} : vector<2x96xf32> to vector<2x64xf32>
    %13 = vector.extract_strided_slice %10 {offsets = [0, 0], sizes = [2, 64], strides = [1, 1]} : vector<2x96xf32> to vector<2x64xf32>
    %14 = arith.addf %12, %13 : vector<2x64xf32>
    %15 = arith.negf %14 : vector<2x64xf32>
    %16 = math.exp %15 : vector<2x64xf32>
    %cst_12 = arith.constant 1.000000e+00 : f32
    %17 = vector.broadcast %cst_12 : f32 to vector<2x64xf32>
    %18 = arith.addf %17, %16 : vector<2x64xf32>
    %19 = arith.divf %17, %18 : vector<2x64xf32>
    %20 = vector.extract_strided_slice %19 {offsets = [0, 0], sizes = [2, 32], strides = [1, 1]} : vector<2x64xf32> to vector<2x32xf32>
    %21 = vector.extract_strided_slice %19 {offsets = [0, 32], sizes = [2, 32], strides = [1, 1]} : vector<2x64xf32> to vector<2x32xf32>
    %22 = vector.extract_strided_slice %11 {offsets = [0, 64], sizes = [2, 32], strides = [1, 1]} : vector<2x96xf32> to vector<2x32xf32>
    %23 = vector.extract_strided_slice %10 {offsets = [0, 64], sizes = [2, 32], strides = [1, 1]} : vector<2x96xf32> to vector<2x32xf32>
    %24 = vector.broadcast %3 : vector<1x32xf32> to vector<2x32xf32>
    %25 = arith.addf %23, %24 : vector<2x32xf32>
    %26 = arith.mulf %20, %25 : vector<2x32xf32>
    %27 = arith.addf %22, %26 : vector<2x32xf32>
    %28 = math.tanh %27 : vector<2x32xf32>
    %cst_13 = arith.constant 1.000000e+00 : f32
    %29 = vector.broadcast %cst_13 : f32 to vector<2x32xf32>
    %30 = arith.subf %29, %21 : vector<2x32xf32>
    %31 = arith.mulf %30, %28 : vector<2x32xf32>
    %32 = arith.mulf %21, %9 : vector<2x32xf32>
    %33 = arith.addf %31, %32 : vector<2x32xf32>
    %cst_14 = arith.constant dense<0.000000e+00> : vector<2x96xf32>
    %34 = tpu.matmul %33, %2, %cst_14 {dimension_numbers = #tpu.dot_dimension_numbers<[1], [0], [0], [1], [0, 0, 1, 1], [], []>} : vector<2x32xf32>, vector<32x96xf32>, vector<2x96xf32> -> vector<2x96xf32>
    %35 = vector.extract_strided_slice %8 {offsets = [2, 0], sizes = [2, 96], strides = [1, 1]} : vector<16x96xf32> to vector<2x96xf32>
    %36 = vector.extract_strided_slice %35 {offsets = [0, 0], sizes = [2, 64], strides = [1, 1]} : vector<2x96xf32> to vector<2x64xf32>
    %37 = vector.extract_strided_slice %34 {offsets = [0, 0], sizes = [2, 64], strides = [1, 1]} : vector<2x96xf32> to vector<2x64xf32>
    %38 = arith.addf %36, %37 : vector<2x64xf32>
    %39 = arith.negf %38 : vector<2x64xf32>
    %40 = math.exp %39 : vector<2x64xf32>
    %cst_15 = arith.constant 1.000000e+00 : f32
    %41 = vector.broadcast %cst_15 : f32 to vector<2x64xf32>
    %42 = arith.addf %41, %40 : vector<2x64xf32>
    %43 = arith.divf %41, %42 : vector<2x64xf32>
    %44 = vector.extract_strided_slice %43 {offsets = [0, 0], sizes = [2, 32], strides = [1, 1]} : vector<2x64xf32> to vector<2x32xf32>
    %45 = vector.extract_strided_slice %43 {offsets = [0, 32], sizes = [2, 32], strides = [1, 1]} : vector<2x64xf32> to vector<2x32xf32>
    %46 = vector.extract_strided_slice %35 {offsets = [0, 64], sizes = [2, 32], strides = [1, 1]} : vector<2x96xf32> to vector<2x32xf32>
    %47 = vector.extract_strided_slice %34 {offsets = [0, 64], sizes = [2, 32], strides = [1, 1]} : vector<2x96xf32> to vector<2x32xf32>
    %48 = vector.broadcast %3 : vector<1x32xf32> to vector<2x32xf32>
    %49 = arith.addf %47, %48 : vector<2x32xf32>
    %50 = arith.mulf %44, %49 : vector<2x32xf32>
    %51 = arith.addf %46, %50 : vector<2x32xf32>
    %52 = math.tanh %51 : vector<2x32xf32>
    %cst_16 = arith.constant 1.000000e+00 : f32
    %53 = vector.broadcast %cst_16 : f32 to vector<2x32xf32>
    %54 = arith.subf %53, %45 : vector<2x32xf32>
    %55 = arith.mulf %54, %52 : vector<2x32xf32>
    %56 = arith.mulf %45, %33 : vector<2x32xf32>
    %57 = arith.addf %55, %56 : vector<2x32xf32>
    %cst_17 = arith.constant dense<0.000000e+00> : vector<2x96xf32>
    %58 = tpu.matmul %57, %2, %cst_17 {dimension_numbers = #tpu.dot_dimension_numbers<[1], [0], [0], [1], [0, 0, 1, 1], [], []>} : vector<2x32xf32>, vector<32x96xf32>, vector<2x96xf32> -> vector<2x96xf32>
    %59 = vector.extract_strided_slice %8 {offsets = [4, 0], sizes = [2, 96], strides = [1, 1]} : vector<16x96xf32> to vector<2x96xf32>
    %60 = vector.extract_strided_slice %59 {offsets = [0, 0], sizes = [2, 64], strides = [1, 1]} : vector<2x96xf32> to vector<2x64xf32>
    %61 = vector.extract_strided_slice %58 {offsets = [0, 0], sizes = [2, 64], strides = [1, 1]} : vector<2x96xf32> to vector<2x64xf32>
    %62 = arith.addf %60, %61 : vector<2x64xf32>
    %63 = arith.negf %62 : vector<2x64xf32>
    %64 = math.exp %63 : vector<2x64xf32>
    %cst_18 = arith.constant 1.000000e+00 : f32
    %65 = vector.broadcast %cst_18 : f32 to vector<2x64xf32>
    %66 = arith.addf %65, %64 : vector<2x64xf32>
    %67 = arith.divf %65, %66 : vector<2x64xf32>
    %68 = vector.extract_strided_slice %67 {offsets = [0, 0], sizes = [2, 32], strides = [1, 1]} : vector<2x64xf32> to vector<2x32xf32>
    %69 = vector.extract_strided_slice %67 {offsets = [0, 32], sizes = [2, 32], strides = [1, 1]} : vector<2x64xf32> to vector<2x32xf32>
    %70 = vector.extract_strided_slice %59 {offsets = [0, 64], sizes = [2, 32], strides = [1, 1]} : vector<2x96xf32> to vector<2x32xf32>
    %71 = vector.extract_strided_slice %58 {offsets = [0, 64], sizes = [2, 32], strides = [1, 1]} : vector<2x96xf32> to vector<2x32xf32>
    %72 = vector.broadcast %3 : vector<1x32xf32> to vector<2x32xf32>
    %73 = arith.addf %71, %72 : vector<2x32xf32>
    %74 = arith.mulf %68, %73 : vector<2x32xf32>
    %75 = arith.addf %70, %74 : vector<2x32xf32>
    %76 = math.tanh %75 : vector<2x32xf32>
    %cst_19 = arith.constant 1.000000e+00 : f32
    %77 = vector.broadcast %cst_19 : f32 to vector<2x32xf32>
    %78 = arith.subf %77, %69 : vector<2x32xf32>
    %79 = arith.mulf %78, %76 : vector<2x32xf32>
    %80 = arith.mulf %69, %57 : vector<2x32xf32>
    %81 = arith.addf %79, %80 : vector<2x32xf32>
    %cst_20 = arith.constant dense<0.000000e+00> : vector<2x96xf32>
    %82 = tpu.matmul %81, %2, %cst_20 {dimension_numbers = #tpu.dot_dimension_numbers<[1], [0], [0], [1], [0, 0, 1, 1], [], []>} : vector<2x32xf32>, vector<32x96xf32>, vector<2x96xf32> -> vector<2x96xf32>
    %83 = vector.extract_strided_slice %8 {offsets = [6, 0], sizes = [2, 96], strides = [1, 1]} : vector<16x96xf32> to vector<2x96xf32>
    %84 = vector.extract_strided_slice %83 {offsets = [0, 0], sizes = [2, 64], strides = [1, 1]} : vector<2x96xf32> to vector<2x64xf32>
    %85 = vector.extract_strided_slice %82 {offsets = [0, 0], sizes = [2, 64], strides = [1, 1]} : vector<2x96xf32> to vector<2x64xf32>
    %86 = arith.addf %84, %85 : vector<2x64xf32>
    %87 = arith.negf %86 : vector<2x64xf32>
    %88 = math.exp %87 : vector<2x64xf32>
    %cst_21 = arith.constant 1.000000e+00 : f32
    %89 = vector.broadcast %cst_21 : f32 to vector<2x64xf32>
    %90 = arith.addf %89, %88 : vector<2x64xf32>
    %91 = arith.divf %89, %90 : vector<2x64xf32>
    %92 = vector.extract_strided_slice %91 {offsets = [0, 0], sizes = [2, 32], strides = [1, 1]} : vector<2x64xf32> to vector<2x32xf32>
    %93 = vector.extract_strided_slice %91 {offsets = [0, 32], sizes = [2, 32], strides = [1, 1]} : vector<2x64xf32> to vector<2x32xf32>
    %94 = vector.extract_strided_slice %83 {offsets = [0, 64], sizes = [2, 32], strides = [1, 1]} : vector<2x96xf32> to vector<2x32xf32>
    %95 = vector.extract_strided_slice %82 {offsets = [0, 64], sizes = [2, 32], strides = [1, 1]} : vector<2x96xf32> to vector<2x32xf32>
    %96 = vector.broadcast %3 : vector<1x32xf32> to vector<2x32xf32>
    %97 = arith.addf %95, %96 : vector<2x32xf32>
    %98 = arith.mulf %92, %97 : vector<2x32xf32>
    %99 = arith.addf %94, %98 : vector<2x32xf32>
    %100 = math.tanh %99 : vector<2x32xf32>
    %cst_22 = arith.constant 1.000000e+00 : f32
    %101 = vector.broadcast %cst_22 : f32 to vector<2x32xf32>
    %102 = arith.subf %101, %93 : vector<2x32xf32>
    %103 = arith.mulf %102, %100 : vector<2x32xf32>
    %104 = arith.mulf %93, %81 : vector<2x32xf32>
    %105 = arith.addf %103, %104 : vector<2x32xf32>
    %cst_23 = arith.constant dense<0.000000e+00> : vector<2x96xf32>
    %106 = tpu.matmul %105, %2, %cst_23 {dimension_numbers = #tpu.dot_dimension_numbers<[1], [0], [0], [1], [0, 0, 1, 1], [], []>} : vector<2x32xf32>, vector<32x96xf32>, vector<2x96xf32> -> vector<2x96xf32>
    %107 = vector.extract_strided_slice %8 {offsets = [8, 0], sizes = [2, 96], strides = [1, 1]} : vector<16x96xf32> to vector<2x96xf32>
    %108 = vector.extract_strided_slice %107 {offsets = [0, 0], sizes = [2, 64], strides = [1, 1]} : vector<2x96xf32> to vector<2x64xf32>
    %109 = vector.extract_strided_slice %106 {offsets = [0, 0], sizes = [2, 64], strides = [1, 1]} : vector<2x96xf32> to vector<2x64xf32>
    %110 = arith.addf %108, %109 : vector<2x64xf32>
    %111 = arith.negf %110 : vector<2x64xf32>
    %112 = math.exp %111 : vector<2x64xf32>
    %cst_24 = arith.constant 1.000000e+00 : f32
    %113 = vector.broadcast %cst_24 : f32 to vector<2x64xf32>
    %114 = arith.addf %113, %112 : vector<2x64xf32>
    %115 = arith.divf %113, %114 : vector<2x64xf32>
    %116 = vector.extract_strided_slice %115 {offsets = [0, 0], sizes = [2, 32], strides = [1, 1]} : vector<2x64xf32> to vector<2x32xf32>
    %117 = vector.extract_strided_slice %115 {offsets = [0, 32], sizes = [2, 32], strides = [1, 1]} : vector<2x64xf32> to vector<2x32xf32>
    %118 = vector.extract_strided_slice %107 {offsets = [0, 64], sizes = [2, 32], strides = [1, 1]} : vector<2x96xf32> to vector<2x32xf32>
    %119 = vector.extract_strided_slice %106 {offsets = [0, 64], sizes = [2, 32], strides = [1, 1]} : vector<2x96xf32> to vector<2x32xf32>
    %120 = vector.broadcast %3 : vector<1x32xf32> to vector<2x32xf32>
    %121 = arith.addf %119, %120 : vector<2x32xf32>
    %122 = arith.mulf %116, %121 : vector<2x32xf32>
    %123 = arith.addf %118, %122 : vector<2x32xf32>
    %124 = math.tanh %123 : vector<2x32xf32>
    %cst_25 = arith.constant 1.000000e+00 : f32
    %125 = vector.broadcast %cst_25 : f32 to vector<2x32xf32>
    %126 = arith.subf %125, %117 : vector<2x32xf32>
    %127 = arith.mulf %126, %124 : vector<2x32xf32>
    %128 = arith.mulf %117, %105 : vector<2x32xf32>
    %129 = arith.addf %127, %128 : vector<2x32xf32>
    %cst_26 = arith.constant dense<0.000000e+00> : vector<2x96xf32>
    %130 = tpu.matmul %129, %2, %cst_26 {dimension_numbers = #tpu.dot_dimension_numbers<[1], [0], [0], [1], [0, 0, 1, 1], [], []>} : vector<2x32xf32>, vector<32x96xf32>, vector<2x96xf32> -> vector<2x96xf32>
    %131 = vector.extract_strided_slice %8 {offsets = [10, 0], sizes = [2, 96], strides = [1, 1]} : vector<16x96xf32> to vector<2x96xf32>
    %132 = vector.extract_strided_slice %131 {offsets = [0, 0], sizes = [2, 64], strides = [1, 1]} : vector<2x96xf32> to vector<2x64xf32>
    %133 = vector.extract_strided_slice %130 {offsets = [0, 0], sizes = [2, 64], strides = [1, 1]} : vector<2x96xf32> to vector<2x64xf32>
    %134 = arith.addf %132, %133 : vector<2x64xf32>
    %135 = arith.negf %134 : vector<2x64xf32>
    %136 = math.exp %135 : vector<2x64xf32>
    %cst_27 = arith.constant 1.000000e+00 : f32
    %137 = vector.broadcast %cst_27 : f32 to vector<2x64xf32>
    %138 = arith.addf %137, %136 : vector<2x64xf32>
    %139 = arith.divf %137, %138 : vector<2x64xf32>
    %140 = vector.extract_strided_slice %139 {offsets = [0, 0], sizes = [2, 32], strides = [1, 1]} : vector<2x64xf32> to vector<2x32xf32>
    %141 = vector.extract_strided_slice %139 {offsets = [0, 32], sizes = [2, 32], strides = [1, 1]} : vector<2x64xf32> to vector<2x32xf32>
    %142 = vector.extract_strided_slice %131 {offsets = [0, 64], sizes = [2, 32], strides = [1, 1]} : vector<2x96xf32> to vector<2x32xf32>
    %143 = vector.extract_strided_slice %130 {offsets = [0, 64], sizes = [2, 32], strides = [1, 1]} : vector<2x96xf32> to vector<2x32xf32>
    %144 = vector.broadcast %3 : vector<1x32xf32> to vector<2x32xf32>
    %145 = arith.addf %143, %144 : vector<2x32xf32>
    %146 = arith.mulf %140, %145 : vector<2x32xf32>
    %147 = arith.addf %142, %146 : vector<2x32xf32>
    %148 = math.tanh %147 : vector<2x32xf32>
    %cst_28 = arith.constant 1.000000e+00 : f32
    %149 = vector.broadcast %cst_28 : f32 to vector<2x32xf32>
    %150 = arith.subf %149, %141 : vector<2x32xf32>
    %151 = arith.mulf %150, %148 : vector<2x32xf32>
    %152 = arith.mulf %141, %129 : vector<2x32xf32>
    %153 = arith.addf %151, %152 : vector<2x32xf32>
    %cst_29 = arith.constant dense<0.000000e+00> : vector<2x96xf32>
    %154 = tpu.matmul %153, %2, %cst_29 {dimension_numbers = #tpu.dot_dimension_numbers<[1], [0], [0], [1], [0, 0, 1, 1], [], []>} : vector<2x32xf32>, vector<32x96xf32>, vector<2x96xf32> -> vector<2x96xf32>
    %155 = vector.extract_strided_slice %8 {offsets = [12, 0], sizes = [2, 96], strides = [1, 1]} : vector<16x96xf32> to vector<2x96xf32>
    %156 = vector.extract_strided_slice %155 {offsets = [0, 0], sizes = [2, 64], strides = [1, 1]} : vector<2x96xf32> to vector<2x64xf32>
    %157 = vector.extract_strided_slice %154 {offsets = [0, 0], sizes = [2, 64], strides = [1, 1]} : vector<2x96xf32> to vector<2x64xf32>
    %158 = arith.addf %156, %157 : vector<2x64xf32>
    %159 = arith.negf %158 : vector<2x64xf32>
    %160 = math.exp %159 : vector<2x64xf32>
    %cst_30 = arith.constant 1.000000e+00 : f32
    %161 = vector.broadcast %cst_30 : f32 to vector<2x64xf32>
    %162 = arith.addf %161, %160 : vector<2x64xf32>
    %163 = arith.divf %161, %162 : vector<2x64xf32>
    %164 = vector.extract_strided_slice %163 {offsets = [0, 0], sizes = [2, 32], strides = [1, 1]} : vector<2x64xf32> to vector<2x32xf32>
    %165 = vector.extract_strided_slice %163 {offsets = [0, 32], sizes = [2, 32], strides = [1, 1]} : vector<2x64xf32> to vector<2x32xf32>
    %166 = vector.extract_strided_slice %155 {offsets = [0, 64], sizes = [2, 32], strides = [1, 1]} : vector<2x96xf32> to vector<2x32xf32>
    %167 = vector.extract_strided_slice %154 {offsets = [0, 64], sizes = [2, 32], strides = [1, 1]} : vector<2x96xf32> to vector<2x32xf32>
    %168 = vector.broadcast %3 : vector<1x32xf32> to vector<2x32xf32>
    %169 = arith.addf %167, %168 : vector<2x32xf32>
    %170 = arith.mulf %164, %169 : vector<2x32xf32>
    %171 = arith.addf %166, %170 : vector<2x32xf32>
    %172 = math.tanh %171 : vector<2x32xf32>
    %cst_31 = arith.constant 1.000000e+00 : f32
    %173 = vector.broadcast %cst_31 : f32 to vector<2x32xf32>
    %174 = arith.subf %173, %165 : vector<2x32xf32>
    %175 = arith.mulf %174, %172 : vector<2x32xf32>
    %176 = arith.mulf %165, %153 : vector<2x32xf32>
    %177 = arith.addf %175, %176 : vector<2x32xf32>
    %cst_32 = arith.constant dense<0.000000e+00> : vector<2x96xf32>
    %178 = tpu.matmul %177, %2, %cst_32 {dimension_numbers = #tpu.dot_dimension_numbers<[1], [0], [0], [1], [0, 0, 1, 1], [], []>} : vector<2x32xf32>, vector<32x96xf32>, vector<2x96xf32> -> vector<2x96xf32>
    %179 = vector.extract_strided_slice %8 {offsets = [14, 0], sizes = [2, 96], strides = [1, 1]} : vector<16x96xf32> to vector<2x96xf32>
    %180 = vector.extract_strided_slice %179 {offsets = [0, 0], sizes = [2, 64], strides = [1, 1]} : vector<2x96xf32> to vector<2x64xf32>
    %181 = vector.extract_strided_slice %178 {offsets = [0, 0], sizes = [2, 64], strides = [1, 1]} : vector<2x96xf32> to vector<2x64xf32>
    %182 = arith.addf %180, %181 : vector<2x64xf32>
    %183 = arith.negf %182 : vector<2x64xf32>
    %184 = math.exp %183 : vector<2x64xf32>
    %cst_33 = arith.constant 1.000000e+00 : f32
    %185 = vector.broadcast %cst_33 : f32 to vector<2x64xf32>
    %186 = arith.addf %185, %184 : vector<2x64xf32>
    %187 = arith.divf %185, %186 : vector<2x64xf32>
    %188 = vector.extract_strided_slice %187 {offsets = [0, 0], sizes = [2, 32], strides = [1, 1]} : vector<2x64xf32> to vector<2x32xf32>
    %189 = vector.extract_strided_slice %187 {offsets = [0, 32], sizes = [2, 32], strides = [1, 1]} : vector<2x64xf32> to vector<2x32xf32>
    %190 = vector.extract_strided_slice %179 {offsets = [0, 64], sizes = [2, 32], strides = [1, 1]} : vector<2x96xf32> to vector<2x32xf32>
    %191 = vector.extract_strided_slice %178 {offsets = [0, 64], sizes = [2, 32], strides = [1, 1]} : vector<2x96xf32> to vector<2x32xf32>
    %192 = vector.broadcast %3 : vector<1x32xf32> to vector<2x32xf32>
    %193 = arith.addf %191, %192 : vector<2x32xf32>
    %194 = arith.mulf %188, %193 : vector<2x32xf32>
    %195 = arith.addf %190, %194 : vector<2x32xf32>
    %196 = math.tanh %195 : vector<2x32xf32>
    %cst_34 = arith.constant 1.000000e+00 : f32
    %197 = vector.broadcast %cst_34 : f32 to vector<2x32xf32>
    %198 = arith.subf %197, %189 : vector<2x32xf32>
    %199 = arith.mulf %198, %196 : vector<2x32xf32>
    %200 = arith.mulf %189, %177 : vector<2x32xf32>
    %201 = arith.addf %199, %200 : vector<2x32xf32>
    %202 = tpu.concatenate %33, %57, %81, %105, %129, %153, %177, %201 in 0 : vector<2x32xf32>, vector<2x32xf32>, vector<2x32xf32>, vector<2x32xf32>, vector<2x32xf32>, vector<2x32xf32>, vector<2x32xf32>, vector<2x32xf32> -> vector<16x32xf32>
    %c0_35 = arith.constant 0 : index
    %c0_36 = arith.constant 0 : index
    %203 = vector.load %arg6[%c0_35, %c0_36] : memref<32x96xf32, #tpu.memory_space<vmem>>, vector<32x96xf32>
    %c0_37 = arith.constant 0 : index
    %c0_38 = arith.constant 0 : index
    %204 = vector.load %arg8[%c0_37, %c0_38] : memref<1x32xf32, #tpu.memory_space<vmem>>, vector<1x32xf32>
    %c0_39 = arith.constant 0 : index
    %c0_40 = arith.constant 0 : index
    %205 = vector.load %arg5[%c0_39, %c0_40] : memref<32x96xf32, #tpu.memory_space<vmem>>, vector<32x96xf32>
    %cst_41 = arith.constant dense<0.000000e+00> : vector<16x96xf32>
    %206 = tpu.matmul %202, %205, %cst_41 {dimension_numbers = #tpu.dot_dimension_numbers<[1], [0], [0], [1], [0, 0, 1, 1], [], []>} : vector<16x32xf32>, vector<32x96xf32>, vector<16x96xf32> -> vector<16x96xf32>
    %c0_42 = arith.constant 0 : index
    %c0_43 = arith.constant 0 : index
    %207 = vector.load %arg7[%c0_42, %c0_43] : memref<1x96xf32, #tpu.memory_space<vmem>>, vector<1x96xf32>
    %208 = vector.broadcast %207 : vector<1x96xf32> to vector<16x96xf32>
    %209 = arith.addf %206, %208 : vector<16x96xf32>
    %cst_44 = arith.constant 0.000000e+00 : f32
    %210 = vector.broadcast %cst_44 : f32 to vector<2x32xf32>
    %cst_45 = arith.constant 0.000000e+00 : f32
    %211 = vector.broadcast %cst_45 : f32 to vector<2x96xf32>
    %212 = vector.extract_strided_slice %209 {offsets = [0, 0], sizes = [2, 96], strides = [1, 1]} : vector<16x96xf32> to vector<2x96xf32>
    %213 = vector.extract_strided_slice %212 {offsets = [0, 0], sizes = [2, 64], strides = [1, 1]} : vector<2x96xf32> to vector<2x64xf32>
    %214 = vector.extract_strided_slice %211 {offsets = [0, 0], sizes = [2, 64], strides = [1, 1]} : vector<2x96xf32> to vector<2x64xf32>
    %215 = arith.addf %213, %214 : vector<2x64xf32>
    %216 = arith.negf %215 : vector<2x64xf32>
    %217 = math.exp %216 : vector<2x64xf32>
    %cst_46 = arith.constant 1.000000e+00 : f32
    %218 = vector.broadcast %cst_46 : f32 to vector<2x64xf32>
    %219 = arith.addf %218, %217 : vector<2x64xf32>
    %220 = arith.divf %218, %219 : vector<2x64xf32>
    %221 = vector.extract_strided_slice %220 {offsets = [0, 0], sizes = [2, 32], strides = [1, 1]} : vector<2x64xf32> to vector<2x32xf32>
    %222 = vector.extract_strided_slice %220 {offsets = [0, 32], sizes = [2, 32], strides = [1, 1]} : vector<2x64xf32> to vector<2x32xf32>
    %223 = vector.extract_strided_slice %212 {offsets = [0, 64], sizes = [2, 32], strides = [1, 1]} : vector<2x96xf32> to vector<2x32xf32>
    %224 = vector.extract_strided_slice %211 {offsets = [0, 64], sizes = [2, 32], strides = [1, 1]} : vector<2x96xf32> to vector<2x32xf32>
    %225 = vector.broadcast %204 : vector<1x32xf32> to vector<2x32xf32>
    %226 = arith.addf %224, %225 : vector<2x32xf32>
    %227 = arith.mulf %221, %226 : vector<2x32xf32>
    %228 = arith.addf %223, %227 : vector<2x32xf32>
    %229 = math.tanh %228 : vector<2x32xf32>
    %cst_47 = arith.constant 1.000000e+00 : f32
    %230 = vector.broadcast %cst_47 : f32 to vector<2x32xf32>
    %231 = arith.subf %230, %222 : vector<2x32xf32>
    %232 = arith.mulf %231, %229 : vector<2x32xf32>
    %233 = arith.mulf %222, %210 : vector<2x32xf32>
    %234 = arith.addf %232, %233 : vector<2x32xf32>
    %cst_48 = arith.constant dense<0.000000e+00> : vector<2x96xf32>
    %235 = tpu.matmul %234, %203, %cst_48 {dimension_numbers = #tpu.dot_dimension_numbers<[1], [0], [0], [1], [0, 0, 1, 1], [], []>} : vector<2x32xf32>, vector<32x96xf32>, vector<2x96xf32> -> vector<2x96xf32>
    %236 = vector.extract_strided_slice %209 {offsets = [2, 0], sizes = [2, 96], strides = [1, 1]} : vector<16x96xf32> to vector<2x96xf32>
    %237 = vector.extract_strided_slice %236 {offsets = [0, 0], sizes = [2, 64], strides = [1, 1]} : vector<2x96xf32> to vector<2x64xf32>
    %238 = vector.extract_strided_slice %235 {offsets = [0, 0], sizes = [2, 64], strides = [1, 1]} : vector<2x96xf32> to vector<2x64xf32>
    %239 = arith.addf %237, %238 : vector<2x64xf32>
    %240 = arith.negf %239 : vector<2x64xf32>
    %241 = math.exp %240 : vector<2x64xf32>
    %cst_49 = arith.constant 1.000000e+00 : f32
    %242 = vector.broadcast %cst_49 : f32 to vector<2x64xf32>
    %243 = arith.addf %242, %241 : vector<2x64xf32>
    %244 = arith.divf %242, %243 : vector<2x64xf32>
    %245 = vector.extract_strided_slice %244 {offsets = [0, 0], sizes = [2, 32], strides = [1, 1]} : vector<2x64xf32> to vector<2x32xf32>
    %246 = vector.extract_strided_slice %244 {offsets = [0, 32], sizes = [2, 32], strides = [1, 1]} : vector<2x64xf32> to vector<2x32xf32>
    %247 = vector.extract_strided_slice %236 {offsets = [0, 64], sizes = [2, 32], strides = [1, 1]} : vector<2x96xf32> to vector<2x32xf32>
    %248 = vector.extract_strided_slice %235 {offsets = [0, 64], sizes = [2, 32], strides = [1, 1]} : vector<2x96xf32> to vector<2x32xf32>
    %249 = vector.broadcast %204 : vector<1x32xf32> to vector<2x32xf32>
    %250 = arith.addf %248, %249 : vector<2x32xf32>
    %251 = arith.mulf %245, %250 : vector<2x32xf32>
    %252 = arith.addf %247, %251 : vector<2x32xf32>
    %253 = math.tanh %252 : vector<2x32xf32>
    %cst_50 = arith.constant 1.000000e+00 : f32
    %254 = vector.broadcast %cst_50 : f32 to vector<2x32xf32>
    %255 = arith.subf %254, %246 : vector<2x32xf32>
    %256 = arith.mulf %255, %253 : vector<2x32xf32>
    %257 = arith.mulf %246, %234 : vector<2x32xf32>
    %258 = arith.addf %256, %257 : vector<2x32xf32>
    %cst_51 = arith.constant dense<0.000000e+00> : vector<2x96xf32>
    %259 = tpu.matmul %258, %203, %cst_51 {dimension_numbers = #tpu.dot_dimension_numbers<[1], [0], [0], [1], [0, 0, 1, 1], [], []>} : vector<2x32xf32>, vector<32x96xf32>, vector<2x96xf32> -> vector<2x96xf32>
    %260 = vector.extract_strided_slice %209 {offsets = [4, 0], sizes = [2, 96], strides = [1, 1]} : vector<16x96xf32> to vector<2x96xf32>
    %261 = vector.extract_strided_slice %260 {offsets = [0, 0], sizes = [2, 64], strides = [1, 1]} : vector<2x96xf32> to vector<2x64xf32>
    %262 = vector.extract_strided_slice %259 {offsets = [0, 0], sizes = [2, 64], strides = [1, 1]} : vector<2x96xf32> to vector<2x64xf32>
    %263 = arith.addf %261, %262 : vector<2x64xf32>
    %264 = arith.negf %263 : vector<2x64xf32>
    %265 = math.exp %264 : vector<2x64xf32>
    %cst_52 = arith.constant 1.000000e+00 : f32
    %266 = vector.broadcast %cst_52 : f32 to vector<2x64xf32>
    %267 = arith.addf %266, %265 : vector<2x64xf32>
    %268 = arith.divf %266, %267 : vector<2x64xf32>
    %269 = vector.extract_strided_slice %268 {offsets = [0, 0], sizes = [2, 32], strides = [1, 1]} : vector<2x64xf32> to vector<2x32xf32>
    %270 = vector.extract_strided_slice %268 {offsets = [0, 32], sizes = [2, 32], strides = [1, 1]} : vector<2x64xf32> to vector<2x32xf32>
    %271 = vector.extract_strided_slice %260 {offsets = [0, 64], sizes = [2, 32], strides = [1, 1]} : vector<2x96xf32> to vector<2x32xf32>
    %272 = vector.extract_strided_slice %259 {offsets = [0, 64], sizes = [2, 32], strides = [1, 1]} : vector<2x96xf32> to vector<2x32xf32>
    %273 = vector.broadcast %204 : vector<1x32xf32> to vector<2x32xf32>
    %274 = arith.addf %272, %273 : vector<2x32xf32>
    %275 = arith.mulf %269, %274 : vector<2x32xf32>
    %276 = arith.addf %271, %275 : vector<2x32xf32>
    %277 = math.tanh %276 : vector<2x32xf32>
    %cst_53 = arith.constant 1.000000e+00 : f32
    %278 = vector.broadcast %cst_53 : f32 to vector<2x32xf32>
    %279 = arith.subf %278, %270 : vector<2x32xf32>
    %280 = arith.mulf %279, %277 : vector<2x32xf32>
    %281 = arith.mulf %270, %258 : vector<2x32xf32>
    %282 = arith.addf %280, %281 : vector<2x32xf32>
    %cst_54 = arith.constant dense<0.000000e+00> : vector<2x96xf32>
    %283 = tpu.matmul %282, %203, %cst_54 {dimension_numbers = #tpu.dot_dimension_numbers<[1], [0], [0], [1], [0, 0, 1, 1], [], []>} : vector<2x32xf32>, vector<32x96xf32>, vector<2x96xf32> -> vector<2x96xf32>
    %284 = vector.extract_strided_slice %209 {offsets = [6, 0], sizes = [2, 96], strides = [1, 1]} : vector<16x96xf32> to vector<2x96xf32>
    %285 = vector.extract_strided_slice %284 {offsets = [0, 0], sizes = [2, 64], strides = [1, 1]} : vector<2x96xf32> to vector<2x64xf32>
    %286 = vector.extract_strided_slice %283 {offsets = [0, 0], sizes = [2, 64], strides = [1, 1]} : vector<2x96xf32> to vector<2x64xf32>
    %287 = arith.addf %285, %286 : vector<2x64xf32>
    %288 = arith.negf %287 : vector<2x64xf32>
    %289 = math.exp %288 : vector<2x64xf32>
    %cst_55 = arith.constant 1.000000e+00 : f32
    %290 = vector.broadcast %cst_55 : f32 to vector<2x64xf32>
    %291 = arith.addf %290, %289 : vector<2x64xf32>
    %292 = arith.divf %290, %291 : vector<2x64xf32>
    %293 = vector.extract_strided_slice %292 {offsets = [0, 0], sizes = [2, 32], strides = [1, 1]} : vector<2x64xf32> to vector<2x32xf32>
    %294 = vector.extract_strided_slice %292 {offsets = [0, 32], sizes = [2, 32], strides = [1, 1]} : vector<2x64xf32> to vector<2x32xf32>
    %295 = vector.extract_strided_slice %284 {offsets = [0, 64], sizes = [2, 32], strides = [1, 1]} : vector<2x96xf32> to vector<2x32xf32>
    %296 = vector.extract_strided_slice %283 {offsets = [0, 64], sizes = [2, 32], strides = [1, 1]} : vector<2x96xf32> to vector<2x32xf32>
    %297 = vector.broadcast %204 : vector<1x32xf32> to vector<2x32xf32>
    %298 = arith.addf %296, %297 : vector<2x32xf32>
    %299 = arith.mulf %293, %298 : vector<2x32xf32>
    %300 = arith.addf %295, %299 : vector<2x32xf32>
    %301 = math.tanh %300 : vector<2x32xf32>
    %cst_56 = arith.constant 1.000000e+00 : f32
    %302 = vector.broadcast %cst_56 : f32 to vector<2x32xf32>
    %303 = arith.subf %302, %294 : vector<2x32xf32>
    %304 = arith.mulf %303, %301 : vector<2x32xf32>
    %305 = arith.mulf %294, %282 : vector<2x32xf32>
    %306 = arith.addf %304, %305 : vector<2x32xf32>
    %cst_57 = arith.constant dense<0.000000e+00> : vector<2x96xf32>
    %307 = tpu.matmul %306, %203, %cst_57 {dimension_numbers = #tpu.dot_dimension_numbers<[1], [0], [0], [1], [0, 0, 1, 1], [], []>} : vector<2x32xf32>, vector<32x96xf32>, vector<2x96xf32> -> vector<2x96xf32>
    %308 = vector.extract_strided_slice %209 {offsets = [8, 0], sizes = [2, 96], strides = [1, 1]} : vector<16x96xf32> to vector<2x96xf32>
    %309 = vector.extract_strided_slice %308 {offsets = [0, 0], sizes = [2, 64], strides = [1, 1]} : vector<2x96xf32> to vector<2x64xf32>
    %310 = vector.extract_strided_slice %307 {offsets = [0, 0], sizes = [2, 64], strides = [1, 1]} : vector<2x96xf32> to vector<2x64xf32>
    %311 = arith.addf %309, %310 : vector<2x64xf32>
    %312 = arith.negf %311 : vector<2x64xf32>
    %313 = math.exp %312 : vector<2x64xf32>
    %cst_58 = arith.constant 1.000000e+00 : f32
    %314 = vector.broadcast %cst_58 : f32 to vector<2x64xf32>
    %315 = arith.addf %314, %313 : vector<2x64xf32>
    %316 = arith.divf %314, %315 : vector<2x64xf32>
    %317 = vector.extract_strided_slice %316 {offsets = [0, 0], sizes = [2, 32], strides = [1, 1]} : vector<2x64xf32> to vector<2x32xf32>
    %318 = vector.extract_strided_slice %316 {offsets = [0, 32], sizes = [2, 32], strides = [1, 1]} : vector<2x64xf32> to vector<2x32xf32>
    %319 = vector.extract_strided_slice %308 {offsets = [0, 64], sizes = [2, 32], strides = [1, 1]} : vector<2x96xf32> to vector<2x32xf32>
    %320 = vector.extract_strided_slice %307 {offsets = [0, 64], sizes = [2, 32], strides = [1, 1]} : vector<2x96xf32> to vector<2x32xf32>
    %321 = vector.broadcast %204 : vector<1x32xf32> to vector<2x32xf32>
    %322 = arith.addf %320, %321 : vector<2x32xf32>
    %323 = arith.mulf %317, %322 : vector<2x32xf32>
    %324 = arith.addf %319, %323 : vector<2x32xf32>
    %325 = math.tanh %324 : vector<2x32xf32>
    %cst_59 = arith.constant 1.000000e+00 : f32
    %326 = vector.broadcast %cst_59 : f32 to vector<2x32xf32>
    %327 = arith.subf %326, %318 : vector<2x32xf32>
    %328 = arith.mulf %327, %325 : vector<2x32xf32>
    %329 = arith.mulf %318, %306 : vector<2x32xf32>
    %330 = arith.addf %328, %329 : vector<2x32xf32>
    %cst_60 = arith.constant dense<0.000000e+00> : vector<2x96xf32>
    %331 = tpu.matmul %330, %203, %cst_60 {dimension_numbers = #tpu.dot_dimension_numbers<[1], [0], [0], [1], [0, 0, 1, 1], [], []>} : vector<2x32xf32>, vector<32x96xf32>, vector<2x96xf32> -> vector<2x96xf32>
    %332 = vector.extract_strided_slice %209 {offsets = [10, 0], sizes = [2, 96], strides = [1, 1]} : vector<16x96xf32> to vector<2x96xf32>
    %333 = vector.extract_strided_slice %332 {offsets = [0, 0], sizes = [2, 64], strides = [1, 1]} : vector<2x96xf32> to vector<2x64xf32>
    %334 = vector.extract_strided_slice %331 {offsets = [0, 0], sizes = [2, 64], strides = [1, 1]} : vector<2x96xf32> to vector<2x64xf32>
    %335 = arith.addf %333, %334 : vector<2x64xf32>
    %336 = arith.negf %335 : vector<2x64xf32>
    %337 = math.exp %336 : vector<2x64xf32>
    %cst_61 = arith.constant 1.000000e+00 : f32
    %338 = vector.broadcast %cst_61 : f32 to vector<2x64xf32>
    %339 = arith.addf %338, %337 : vector<2x64xf32>
    %340 = arith.divf %338, %339 : vector<2x64xf32>
    %341 = vector.extract_strided_slice %340 {offsets = [0, 0], sizes = [2, 32], strides = [1, 1]} : vector<2x64xf32> to vector<2x32xf32>
    %342 = vector.extract_strided_slice %340 {offsets = [0, 32], sizes = [2, 32], strides = [1, 1]} : vector<2x64xf32> to vector<2x32xf32>
    %343 = vector.extract_strided_slice %332 {offsets = [0, 64], sizes = [2, 32], strides = [1, 1]} : vector<2x96xf32> to vector<2x32xf32>
    %344 = vector.extract_strided_slice %331 {offsets = [0, 64], sizes = [2, 32], strides = [1, 1]} : vector<2x96xf32> to vector<2x32xf32>
    %345 = vector.broadcast %204 : vector<1x32xf32> to vector<2x32xf32>
    %346 = arith.addf %344, %345 : vector<2x32xf32>
    %347 = arith.mulf %341, %346 : vector<2x32xf32>
    %348 = arith.addf %343, %347 : vector<2x32xf32>
    %349 = math.tanh %348 : vector<2x32xf32>
    %cst_62 = arith.constant 1.000000e+00 : f32
    %350 = vector.broadcast %cst_62 : f32 to vector<2x32xf32>
    %351 = arith.subf %350, %342 : vector<2x32xf32>
    %352 = arith.mulf %351, %349 : vector<2x32xf32>
    %353 = arith.mulf %342, %330 : vector<2x32xf32>
    %354 = arith.addf %352, %353 : vector<2x32xf32>
    %cst_63 = arith.constant dense<0.000000e+00> : vector<2x96xf32>
    %355 = tpu.matmul %354, %203, %cst_63 {dimension_numbers = #tpu.dot_dimension_numbers<[1], [0], [0], [1], [0, 0, 1, 1], [], []>} : vector<2x32xf32>, vector<32x96xf32>, vector<2x96xf32> -> vector<2x96xf32>
    %356 = vector.extract_strided_slice %209 {offsets = [12, 0], sizes = [2, 96], strides = [1, 1]} : vector<16x96xf32> to vector<2x96xf32>
    %357 = vector.extract_strided_slice %356 {offsets = [0, 0], sizes = [2, 64], strides = [1, 1]} : vector<2x96xf32> to vector<2x64xf32>
    %358 = vector.extract_strided_slice %355 {offsets = [0, 0], sizes = [2, 64], strides = [1, 1]} : vector<2x96xf32> to vector<2x64xf32>
    %359 = arith.addf %357, %358 : vector<2x64xf32>
    %360 = arith.negf %359 : vector<2x64xf32>
    %361 = math.exp %360 : vector<2x64xf32>
    %cst_64 = arith.constant 1.000000e+00 : f32
    %362 = vector.broadcast %cst_64 : f32 to vector<2x64xf32>
    %363 = arith.addf %362, %361 : vector<2x64xf32>
    %364 = arith.divf %362, %363 : vector<2x64xf32>
    %365 = vector.extract_strided_slice %364 {offsets = [0, 0], sizes = [2, 32], strides = [1, 1]} : vector<2x64xf32> to vector<2x32xf32>
    %366 = vector.extract_strided_slice %364 {offsets = [0, 32], sizes = [2, 32], strides = [1, 1]} : vector<2x64xf32> to vector<2x32xf32>
    %367 = vector.extract_strided_slice %356 {offsets = [0, 64], sizes = [2, 32], strides = [1, 1]} : vector<2x96xf32> to vector<2x32xf32>
    %368 = vector.extract_strided_slice %355 {offsets = [0, 64], sizes = [2, 32], strides = [1, 1]} : vector<2x96xf32> to vector<2x32xf32>
    %369 = vector.broadcast %204 : vector<1x32xf32> to vector<2x32xf32>
    %370 = arith.addf %368, %369 : vector<2x32xf32>
    %371 = arith.mulf %365, %370 : vector<2x32xf32>
    %372 = arith.addf %367, %371 : vector<2x32xf32>
    %373 = math.tanh %372 : vector<2x32xf32>
    %cst_65 = arith.constant 1.000000e+00 : f32
    %374 = vector.broadcast %cst_65 : f32 to vector<2x32xf32>
    %375 = arith.subf %374, %366 : vector<2x32xf32>
    %376 = arith.mulf %375, %373 : vector<2x32xf32>
    %377 = arith.mulf %366, %354 : vector<2x32xf32>
    %378 = arith.addf %376, %377 : vector<2x32xf32>
    %cst_66 = arith.constant dense<0.000000e+00> : vector<2x96xf32>
    %379 = tpu.matmul %378, %203, %cst_66 {dimension_numbers = #tpu.dot_dimension_numbers<[1], [0], [0], [1], [0, 0, 1, 1], [], []>} : vector<2x32xf32>, vector<32x96xf32>, vector<2x96xf32> -> vector<2x96xf32>
    %380 = vector.extract_strided_slice %209 {offsets = [14, 0], sizes = [2, 96], strides = [1, 1]} : vector<16x96xf32> to vector<2x96xf32>
    %381 = vector.extract_strided_slice %380 {offsets = [0, 0], sizes = [2, 64], strides = [1, 1]} : vector<2x96xf32> to vector<2x64xf32>
    %382 = vector.extract_strided_slice %379 {offsets = [0, 0], sizes = [2, 64], strides = [1, 1]} : vector<2x96xf32> to vector<2x64xf32>
    %383 = arith.addf %381, %382 : vector<2x64xf32>
    %384 = arith.negf %383 : vector<2x64xf32>
    %385 = math.exp %384 : vector<2x64xf32>
    %cst_67 = arith.constant 1.000000e+00 : f32
    %386 = vector.broadcast %cst_67 : f32 to vector<2x64xf32>
    %387 = arith.addf %386, %385 : vector<2x64xf32>
    %388 = arith.divf %386, %387 : vector<2x64xf32>
    %389 = vector.extract_strided_slice %388 {offsets = [0, 0], sizes = [2, 32], strides = [1, 1]} : vector<2x64xf32> to vector<2x32xf32>
    %390 = vector.extract_strided_slice %388 {offsets = [0, 32], sizes = [2, 32], strides = [1, 1]} : vector<2x64xf32> to vector<2x32xf32>
    %391 = vector.extract_strided_slice %380 {offsets = [0, 64], sizes = [2, 32], strides = [1, 1]} : vector<2x96xf32> to vector<2x32xf32>
    %392 = vector.extract_strided_slice %379 {offsets = [0, 64], sizes = [2, 32], strides = [1, 1]} : vector<2x96xf32> to vector<2x32xf32>
    %393 = vector.broadcast %204 : vector<1x32xf32> to vector<2x32xf32>
    %394 = arith.addf %392, %393 : vector<2x32xf32>
    %395 = arith.mulf %389, %394 : vector<2x32xf32>
    %396 = arith.addf %391, %395 : vector<2x32xf32>
    %397 = math.tanh %396 : vector<2x32xf32>
    %cst_68 = arith.constant 1.000000e+00 : f32
    %398 = vector.broadcast %cst_68 : f32 to vector<2x32xf32>
    %399 = arith.subf %398, %390 : vector<2x32xf32>
    %400 = arith.mulf %399, %397 : vector<2x32xf32>
    %401 = arith.mulf %390, %378 : vector<2x32xf32>
    %402 = arith.addf %400, %401 : vector<2x32xf32>
    %403 = tpu.concatenate %234, %258, %282, %306, %330, %354, %378, %402 in 0 : vector<2x32xf32>, vector<2x32xf32>, vector<2x32xf32>, vector<2x32xf32>, vector<2x32xf32>, vector<2x32xf32>, vector<2x32xf32>, vector<2x32xf32> -> vector<16x32xf32>
    %c0_69 = arith.constant 0 : index
    %c0_70 = arith.constant 0 : index
    %404 = vector.load %arg9[%c0_69, %c0_70] : memref<32x40xf32, #tpu.memory_space<vmem>>, vector<32x40xf32>
    %cst_71 = arith.constant dense<0.000000e+00> : vector<16x40xf32>
    %405 = tpu.matmul %403, %404, %cst_71 {dimension_numbers = #tpu.dot_dimension_numbers<[1], [0], [0], [1], [0, 0, 1, 1], [], []>} : vector<16x32xf32>, vector<32x40xf32>, vector<16x40xf32> -> vector<16x40xf32>
    %c0_72 = arith.constant 0 : index
    %c0_73 = arith.constant 0 : index
    %406 = vector.load %arg10[%c0_72, %c0_73] : memref<1x40xf32, #tpu.memory_space<vmem>>, vector<1x40xf32>
    %407 = vector.broadcast %406 : vector<1x40xf32> to vector<16x40xf32>
    %408 = arith.addf %405, %407 : vector<16x40xf32>
    %cst_74 = arith.constant dense<0xFF800000> : vector<16xf32>
    %409 = vector.multi_reduction <maximumf>, %408, %cst_74 [1] : vector<16x40xf32> to vector<16xf32>
    %410 = vector.shape_cast %409 : vector<16xf32> to vector<16x1xf32>
    %411 = vector.broadcast %410 : vector<16x1xf32> to vector<16x40xf32>
    %412 = arith.subf %408, %411 : vector<16x40xf32>
    %413 = math.exp %412 : vector<16x40xf32>
    %cst_75 = arith.constant dense<0.000000e+00> : vector<16xf32>
    %414 = vector.multi_reduction <add>, %413, %cst_75 [1] : vector<16x40xf32> to vector<16xf32>
    %415 = vector.shape_cast %414 : vector<16xf32> to vector<16x1xf32>
    %416 = vector.broadcast %415 : vector<16x1xf32> to vector<16x40xf32>
    %417 = arith.divf %413, %416 : vector<16x40xf32>
    %418 = vector.shape_cast %417 : vector<16x40xf32> to vector<8x2x40xf32>
    %c0_76 = arith.constant 0 : index
    %c0_77 = arith.constant 0 : index
    %c0_78 = arith.constant 0 : index
    %419 = vector.load %arg11[%c0_76, %c0_77, %c0_78] : memref<8x2x40xf32, #tpu.memory_space<vmem>>, vector<8x2x40xf32>
    tpu.vector_store %arg11[%c0_76, %c0_77, %c0_78], %418 {strides = array<i32>} : memref<8x2x40xf32, #tpu.memory_space<vmem>>, vector<8x2x40xf32>,
    return
  }
}

</mosaic_0001>

<llo_original>
// kernel: measure_gpt_forward.1
$region0: #{measure_gpt_forward.1}
  #allocation0 [shape = 'u32[]', space=smem, size = 0x4, offset = 0x4, fixed_abs, tag = 'smem constant byte address 0x4 - core index']
  #allocation1 [shape = 'u32[144,128]{1,0:T(1,128)}', space=vmem, size = 0x12000, scoped, tag = 'internal scratch']
  %s0 = inlined_call_operand.vmem [shape: f32[8,2,32], index: 0, kind: input, shape index: {}]
  %s1 = inlined_call_operand.vmem [shape: f32[32,96], index: 1, kind: input, shape index: {}]
  %s2 = inlined_call_operand.vmem [shape: f32[32,96], index: 2, kind: input, shape index: {}]
  %s3 = inlined_call_operand.vmem [shape: f32[1,96], index: 3, kind: input, shape index: {}]
  %s4 = inlined_call_operand.vmem [shape: f32[1,32], index: 4, kind: input, shape index: {}]
  %s5 = inlined_call_operand.vmem [shape: f32[32,96], index: 5, kind: input, shape index: {}]
  %s6 = inlined_call_operand.vmem [shape: f32[32,96], index: 6, kind: input, shape index: {}]
  %s7 = inlined_call_operand.vmem [shape: f32[1,96], index: 7, kind: input, shape index: {}]
  %s8 = inlined_call_operand.vmem [shape: f32[1,32], index: 8, kind: input, shape index: {}]
  %s9 = inlined_call_operand.vmem [shape: f32[32,40], index: 9, kind: input, shape index: {}]
  %s10 = inlined_call_operand.vmem [shape: f32[1,40], index: 10, kind: input, shape index: {}]
  %s11 = inlined_call_operand.vmem [shape: f32[8,2,40], index: 11, kind: output, shape index: {}]
  %s12 = sld [smem:[#allocation0]]
  $region54: #{measure_gpt_forward.1} parent=0
    _
  %s14 = ssub.s32 1, %s12
  %s15 = scalar_select 0, %s14, %s12
  // Predicated region
  $region2: #{measure_gpt_forward.1} parent=0 // pred_check
    _
  $region3: #{measure_gpt_forward.1} parent=0 // pred_check_branch
    %17 = sbr.rel (0) target = $region5
  $region4: #{measure_gpt_forward.1} parent=0 // pred_region
    _
  $region5: #{measure_gpt_forward.1} parent=0 // pred_fallthru
    _
  // Predicated region
  $region6: #{measure_gpt_forward.1} parent=0 // pred_check
    _
  $region7: #{measure_gpt_forward.1} parent=0 // pred_check_branch
    %19 = sbr.rel (0) target = $region9
  $region8: #{measure_gpt_forward.1} parent=0 // pred_region
    _
  $region9: #{measure_gpt_forward.1} parent=0 // pred_fallthru
    _
  // Predicated region
  $region10: #{measure_gpt_forward.1} parent=0 // pred_check
    _
  $region11: #{measure_gpt_forward.1} parent=0 // pred_check_branch
    %21 = sbr.rel (0) target = $region13
  $region12: #{measure_gpt_forward.1} parent=0 // pred_region
    _
  $region13: #{measure_gpt_forward.1} parent=0 // pred_fallthru
    _
  // Predicated region
  $region14: #{measure_gpt_forward.1} parent=0 // pred_check
    _
  $region15: #{measure_gpt_forward.1} parent=0 // pred_check_branch
    %23 = sbr.rel (0) target = $region17
  $region16: #{measure_gpt_forward.1} parent=0 // pred_region
    _
  $region17: #{measure_gpt_forward.1} parent=0 // pred_fallthru
    _
  // Predicated region
  $region18: #{measure_gpt_forward.1} parent=0 // pred_check
    _
  $region19: #{measure_gpt_forward.1} parent=0 // pred_check_branch
    %25 = sbr.rel (0) target = $region21
  $region20: #{measure_gpt_forward.1} parent=0 // pred_region
    _
  $region21: #{measure_gpt_forward.1} parent=0 // pred_fallthru
    _
  // Predicated region
  $region22: #{measure_gpt_forward.1} parent=0 // pred_check
    _
  $region23: #{measure_gpt_forward.1} parent=0 // pred_check_branch
    %27 = sbr.rel (0) target = $region25
  $region24: #{measure_gpt_forward.1} parent=0 // pred_region
    _
  $region25: #{measure_gpt_forward.1} parent=0 // pred_fallthru
    _
  // Predicated region
  $region26: #{measure_gpt_forward.1} parent=0 // pred_check
    _
  $region27: #{measure_gpt_forward.1} parent=0 // pred_check_branch
    %29 = sbr.rel (0) target = $region29
  $region28: #{measure_gpt_forward.1} parent=0 // pred_region
    _
  $region29: #{measure_gpt_forward.1} parent=0 // pred_fallthru
    _
  // Predicated region
  $region30: #{measure_gpt_forward.1} parent=0 // pred_check
    _
  $region31: #{measure_gpt_forward.1} parent=0 // pred_check_branch
    %31 = sbr.rel (0) target = $region33
  $region32: #{measure_gpt_forward.1} parent=0 // pred_region
    _
  $region33: #{measure_gpt_forward.1} parent=0 // pred_fallthru
    _
  // Predicated region
  $region34: #{measure_gpt_forward.1} parent=0 // pred_check
    _
  $region35: #{measure_gpt_forward.1} parent=0 // pred_check_branch
    %33 = sbr.rel (0) target = $region37
  $region36: #{measure_gpt_forward.1} parent=0 // pred_region
    _
  $region37: #{measure_gpt_forward.1} parent=0 // pred_fallthru
    _
  // Predicated region
  $region38: #{measure_gpt_forward.1} parent=0 // pred_check
    _
  $region39: #{measure_gpt_forward.1} parent=0 // pred_check_branch
    %35 = sbr.rel (0) target = $region41
  $region40: #{measure_gpt_forward.1} parent=0 // pred_region
    _
  $region41: #{measure_gpt_forward.1} parent=0 // pred_fallthru
    _
  // Predicated region
  $region42: #{measure_gpt_forward.1} parent=0 // pred_check
    _
  $region43: #{measure_gpt_forward.1} parent=0 // pred_check_branch
    %37 = sbr.rel (0) target = $region45
  $region44: #{measure_gpt_forward.1} parent=0 // pred_region
    _
  $region45: #{measure_gpt_forward.1} parent=0 // pred_fallthru
    _
  %v38 = vld [vmem:[%s0] sm:$0x3]
  %v39 = vld [vmem:[%s0 + $0x2] sm:$0x3]
  %v40 = vld [vmem:[%s0 + $0x4] sm:$0x3]
  %v41 = vld [vmem:[%s0 + $0x6] sm:$0x3]
  %v42 = vld [vmem:[%s0 + $0x8] sm:$0x3]
  %v43 = vld [vmem:[%s0 + $0xa] sm:$0x3]
  %v44 = vld [vmem:[%s0 + $0xc] sm:$0x3]
  %v45 = vld [vmem:[%s0 + $0xe] sm:$0x3]
  %v46 = vld [vmem:[%s2] sm:$0xff]
  %v47 = vld [vmem:[%s2 + $0x8] sm:$0xff]
  %v48 = vld [vmem:[%s2 + $0x10] sm:$0xff]
  %v49 = vld [vmem:[%s2 + $0x18] sm:$0xff]
  %v50 = vld [vmem:[%s4] sm:$0x1]
  %v51 = vld [vmem:[%s1] sm:$0xff]
  %v52 = vld [vmem:[%s1 + $0x8] sm:$0xff]
  %v53 = vld [vmem:[%s1 + $0x10] sm:$0xff]
  %v54 = vld [vmem:[%s1 + $0x18] sm:$0xff]
  %v55 = vld [vmem:[%s3] sm:$0x1]
  %v57 = vlaneseq
  %v58 = vshrl.u32 %v57, 7
  %v59 = vsub.s32 0, %v58
  %v60 = vrot.slane %v55, %v59
  %v70 = vcombine.low %v38, %v39
  %v71 = vcombine.low %v40, %v41
  %v73 = vunpack.c.l.s4 1983009808
  %v74 = vunpack.c.0.s8 %v73
  %v75 = vlaneseq
  %v76 = vshrl.u32 %v75, 7
  %v77 = vsub.s32 %v74, %v76
  %v78 = vrot.slane %v70, %v77
  %v80 = vunpack.c.l.s4 1983009808
  %v81 = vunpack.c.0.s8 %v80
  %v82 = vlaneseq
  %v83 = vshrl.u32 %v82, 7
  %v84 = vsub.s32 %v81, %v83
  %v85 = vrot.slane %v71, %v84
  %v86 = vcombine.low %v78, %v85
  %v87 = vcombine.low %v42, %v43
  %v88 = vcombine.low %v44, %v45
  %v90 = vunpack.c.l.s4 1983009808
  %v91 = vunpack.c.0.s8 %v90
  %v92 = vlaneseq
  %v93 = vshrl.u32 %v92, 7
  %v94 = vsub.s32 %v91, %v93
  %v95 = vrot.slane %v87, %v94
  %v97 = vunpack.c.l.s4 1983009808
  %v98 = vunpack.c.0.s8 %v97
  %v99 = vlaneseq
  %v100 = vshrl.u32 %v99, 7
  %v101 = vsub.s32 %v98, %v100
  %v102 = vrot.slane %v88, %v101
  %v103 = vcombine.low %v95, %v102
  %vm104 = vcmask 261120
  %v105 = vsel %vm104, %v86, 0
  %v107 = vsel %vm104, %v103, 0
  %109 = vmatprep.subr.mxu0 0.0
  %110 = vmatpush1.msra.mxu0 %v51
  %111 = vmatprep.subr.mxu0 0.0
  %112 = vmatpush1.msra.mxu0 %v52
  %113 = vmatprep.subr.mxu0 0.0
  %114 = vmatpush1.msra.mxu0 %v53
  %115 = vmatprep.subr.mxu0 0.0
  %116 = vmatpush1.msra.mxu0 %v54
  %117 = vmatprep.subr.mxu0 0.0
  %118 = vmatpush1.msra.mxu0 0.0
  %119 = vmatprep.subr.mxu0 0.0
  %120 = vmatpush1.msra.mxu0 0.0
  %121 = vmatprep.subr.mxu0 0.0
  %122 = vmatpush1.msra.mxu0 0.0
  %123 = vmatprep.subr.mxu0 0.0
  %124 = vmatpush1.msra.mxu0 0.0
  %125 = vmatprep.subr.mxu0 0.0
  %126 = vmatpush1.msra.mxu0 0.0
  %127 = vmatprep.subr.mxu0 0.0
  %128 = vmatpush1.msra.mxu0 0.0
  %129 = vmatprep.subr.mxu0 0.0
  %130 = vmatpush1.msra.mxu0 0.0
  %131 = vmatprep.subr.mxu0 0.0
  %132 = vmatpush1.msra.mxu0 0.0
  %133 = vmatprep.subr.mxu0 0.0
  %134 = vmatpush1.msra.mxu0 0.0
  %135 = vmatprep.subr.mxu0 0.0
  %136 = vmatpush1.msra.mxu0 0.0
  %137 = vmatprep.subr.mxu0 0.0
  %138 = vmatpush1.msra.mxu0 0.0
  %139 = vmatprep.subr.mxu0 0.0
  %140 = vmatpush1.msra.mxu0 0.0
  %141 = vmatprep.subr.mxu0 0.0
  %142 = vmatpush1.msra.mxu0 0.0
  %143 = vmatprep.subr.mxu0 0.0
  %144 = vmatpush1.msra.mxu0 0.0
  %145 = vmatprep.subr.mxu0 0.0
  %146 = vmatpush1.msra.mxu0 0.0
  %147 = vmatprep.subr.mxu0 0.0
  %148 = vmatpush1.msra.mxu0 0.0
  %149 = vmatprep.subr.mxu0 0.0
  %150 = vmatpush1.msra.mxu0 0.0
  %151 = vmatprep.subr.mxu0 0.0
  %152 = vmatpush1.msra.mxu0 0.0
  %153 = vmatprep.subr.mxu0 0.0
  %154 = vmatpush1.msra.mxu0 0.0
  %155 = vmatprep.subr.mxu0 0.0
  %156 = vmatpush1.msra.mxu0 0.0
  %157 = vmatprep.subr.mxu0 0.0
  %158 = vmatpush1.msra.mxu0 0.0
  %159 = vmatprep.subr.mxu0 0.0
  %160 = vmatpush1.msra.mxu0 0.0
  %161 = vmatprep.subr.mxu0 0.0
  %162 = vmatpush1.msra.mxu0 0.0
  %163 = vmatprep.subr.mxu0 0.0
  %164 = vmatpush1.msra.mxu0 0.0
  %165 = vmatprep.subr.mxu0 0.0
  %166 = vmatpush1.msra.mxu0 0.0
  %167 = vmatprep.subr.mxu0 0.0
  %168 = vmatpush1.msra.mxu0 0.0
  %169 = vmatprep.subr.mxu0 0.0
  %170 = vmatpush1.msra.mxu0 0.0
  %171 = vmatprep.subr.mxu0 0.0
  %172 = vmatpush1.msra.mxu0 0.0
  %173 = vmatprep.mubr.f32.mxu0 0.0
  %174 = vmatmul.mubr.f32.gmra.mrb[0].mxu0 %v105
  %v175 = vpop.f32.mrb[0].mxu0
  %v176 = vadd.f32 %v60, %v175
  %v177 = vpop.f32.mrb[0].mxu0
  %178 = vmatprep.mubr.f32.mxu0 0.0
  %179 = vmatmul.mubr.f32.gmra.mrb[0].mxu0 %v107
  %v180 = vpop.f32.mrb[0].mxu0
  %v181 = vadd.f32 %v60, %v180
  %v182 = vpop.f32.mrb[0].mxu0
  %183 = vdwg.mxu0
  %v184 = vadd.f32 %v176, 0.0
  %v185 = vxor.u32 %v184, 2147483648
  %v186 = vmul.f32 %v185, 1.442695
  %v187 = vpow.pop %v186
  %v188 = vadd.f32 %v187, 1.0
  %v189 = vrcp.pop %v188
  %v190 = vmul.f32 1.0, %v189
  %v192 = vlaneseq
  %v193 = vshrl.u32 %v192, 7
  %v194 = vsub.s32 0, %v193
  %v195 = vrot.slane %v50, %v194
  %v197 = vadd.f32 %v195, 0.0
  %v198 = vmul.f32 %v190, %v197
  %200 = vrot.lane.b32.xlu0 %v198, 64
  %v201 = vpop.permute.xlu0 %200
  %v203 = vadd.f32 %v176, %v201
  %v204 = vtanh.pop %v203
  %v205 = vsub.f32 1.0, %v190
  %207 = vrot.lane.b32.xlu0 %v204, 96
  %v208 = vpop.permute.xlu0 %207
  %v210 = vmul.f32 %v205, %v208
  %v211 = vmul.f32 %v190, 0.0
  %v212 = vadd.f32 %v210, %v211
  %214 = vrot.lane.b32.xlu0 %v212, 96
  %v215 = vpop.permute.xlu0 %214
  %v216 = vsel %vm104, %v215, 0
  %218 = vmatprep.subr.mxu0 0.0
  %219 = vmatpush1.msra.mxu0 %v46
  %220 = vmatprep.subr.mxu0 0.0
  %221 = vmatpush1.msra.mxu0 %v47
  %222 = vmatprep.subr.mxu0 0.0
  %223 = vmatpush1.msra.mxu0 %v48
  %224 = vmatprep.subr.mxu0 0.0
  %225 = vmatpush1.msra.mxu0 %v49
  %226 = vmatprep.subr.mxu0 0.0
  %227 = vmatpush1.msra.mxu0 0.0
  %228 = vmatprep.subr.mxu0 0.0
  %229 = vmatpush1.msra.mxu0 0.0
  %230 = vmatprep.subr.mxu0 0.0
  %231 = vmatpush1.msra.mxu0 0.0
  %232 = vmatprep.subr.mxu0 0.0
  %233 = vmatpush1.msra.mxu0 0.0
  %234 = vmatprep.subr.mxu0 0.0
  %235 = vmatpush1.msra.mxu0 0.0
  %236 = vmatprep.subr.mxu0 0.0
  %237 = vmatpush1.msra.mxu0 0.0
  %238 = vmatprep.subr.mxu0 0.0
  %239 = vmatpush1.msra.mxu0 0.0
  %240 = vmatprep.subr.mxu0 0.0
  %241 = vmatpush1.msra.mxu0 0.0
  %242 = vmatprep.subr.mxu0 0.0
  %243 = vmatpush1.msra.mxu0 0.0
  %244 = vmatprep.subr.mxu0 0.0
  %245 = vmatpush1.msra.mxu0 0.0
  %246 = vmatprep.subr.mxu0 0.0
  %247 = vmatpush1.msra.mxu0 0.0
  %248 = vmatprep.subr.mxu0 0.0
  %249 = vmatpush1.msra.mxu0 0.0
  %250 = vmatprep.subr.mxu0 0.0
  %251 = vmatpush1.msra.mxu0 0.0
  %252 = vmatprep.subr.mxu0 0.0
  %253 = vmatpush1.msra.mxu0 0.0
  %254 = vmatprep.subr.mxu0 0.0
  %255 = vmatpush1.msra.mxu0 0.0
  %256 = vmatprep.subr.mxu0 0.0
  %257 = vmatpush1.msra.mxu0 0.0
  %258 = vmatprep.subr.mxu0 0.0
  %259 = vmatpush1.msra.mxu0 0.0
  %260 = vmatprep.subr.mxu0 0.0
  %261 = vmatpush1.msra.mxu0 0.0
  %262 = vmatprep.subr.mxu0 0.0
  %263 = vmatpush1.msra.mxu0 0.0
  %264 = vmatprep.subr.mxu0 0.0
  %265 = vmatpush1.msra.mxu0 0.0
  %266 = vmatprep.subr.mxu0 0.0
  %267 = vmatpush1.msra.mxu0 0.0
  %268 = vmatprep.subr.mxu0 0.0
  %269 = vmatpush1.msra.mxu0 0.0
  %270 = vmatprep.subr.mxu0 0.0
  %271 = vmatpush1.msra.mxu0 0.0
  %272 = vmatprep.subr.mxu0 0.0
  %273 = vmatpush1.msra.mxu0 0.0
  %274 = vmatprep.subr.mxu0 0.0
  %275 = vmatpush1.msra.mxu0 0.0
  %276 = vmatprep.subr.mxu0 0.0
  %277 = vmatpush1.msra.mxu0 0.0
  %278 = vmatprep.subr.mxu0 0.0
  %279 = vmatpush1.msra.mxu0 0.0
  %280 = vmatprep.subr.mxu0 0.0
  %281 = vmatpush1.msra.mxu0 0.0
  %282 = vmatprep.mubr.f32.mxu0 0.0
  %283 = vmatmul.mubr.f32.gmra.mrb[0].mxu0 %v216
  %v284 = vpop.f32.mrb[0].mxu0
  %v285 = vadd.f32 0.0, %v284
  %v286 = vpop.f32.mrb[0].mxu0
  %287 = vdwg.mxu0
  %v289 = vrot.slane %v285, 6
  %v291 = vadd.f32 %v176, %v289
  %v292 = vxor.u32 %v291, 2147483648
  %v293 = vmul.f32 %v292, 1.442695
  %v294 = vpow.pop %v293
  %v295 = vadd.f32 %v294, 1.0
  %v296 = vrcp.pop %v295
  %v297 = vmul.f32 1.0, %v296
  %298 = vrot.lane.b32.xlu0 %v195, 64
  %v299 = vpop.permute.xlu0 %298
  %v301 = vadd.f32 %v285, %v299
  %v303 = vrot.slane %v301, 6
  %304 = vrot.lane.b32.xlu0 %v303, 64
  %v305 = vpop.permute.xlu0 %304
  %v307 = vmul.f32 %v297, %v305
  %309 = vrot.lane.b32.xlu0 %v307, 64
  %v310 = vpop.permute.xlu0 %309
  %v312 = vadd.f32 %v176, %v310
  %v313 = vtanh.pop %v312
  %v314 = vsub.f32 1.0, %v297
  %316 = vrot.lane.b32.xlu0 %v313, 96
  %v317 = vpop.permute.xlu0 %316
  %v319 = vmul.f32 %v314, %v317
  %v320 = vrot.slane %v212, 6
  %v322 = vmul.f32 %v297, %v320
  %v323 = vadd.f32 %v319, %v322
  %v325 = vrot.slane %v323, 2
  %326 = vrot.lane.b32.xlu0 %v325, 96
  %v327 = vpop.permute.xlu0 %326
  %v328 = vsel %vm104, %v327, 0
  %330 = vmatprep.subr.mxu0 0.0
  %331 = vmatpush1.msra.mxu0 %v46
  %332 = vmatprep.subr.mxu0 0.0
  %333 = vmatpush1.msra.mxu0 %v47
  %334 = vmatprep.subr.mxu0 0.0
  %335 = vmatpush1.msra.mxu0 %v48
  %336 = vmatprep.subr.mxu0 0.0
  %337 = vmatpush1.msra.mxu0 %v49
  %338 = vmatprep.subr.mxu0 0.0
  %339 = vmatpush1.msra.mxu0 0.0
  %340 = vmatprep.subr.mxu0 0.0
  %341 = vmatpush1.msra.mxu0 0.0
  %342 = vmatprep.subr.mxu0 0.0
  %343 = vmatpush1.msra.mxu0 0.0
  %344 = vmatprep.subr.mxu0 0.0
  %345 = vmatpush1.msra.mxu0 0.0
  %346 = vmatprep.subr.mxu0 0.0
  %347 = vmatpush1.msra.mxu0 0.0
  %348 = vmatprep.subr.mxu0 0.0
  %349 = vmatpush1.msra.mxu0 0.0
  %350 = vmatprep.subr.mxu0 0.0
  %351 = vmatpush1.msra.mxu0 0.0
  %352 = vmatprep.subr.mxu0 0.0
  %353 = vmatpush1.msra.mxu0 0.0
  %354 = vmatprep.subr.mxu0 0.0
  %355 = vmatpush1.msra.mxu0 0.0
  %356 = vmatprep.subr.mxu0 0.0
  %357 = vmatpush1.msra.mxu0 0.0
  %358 = vmatprep.subr.mxu0 0.0
  %359 = vmatpush1.msra.mxu0 0.0
  %360 = vmatprep.subr.mxu0 0.0
  %361 = vmatpush1.msra.mxu0 0.0
  %362 = vmatprep.subr.mxu0 0.0
  %363 = vmatpush1.msra.mxu0 0.0
  %364 = vmatprep.subr.mxu0 0.0
  %365 = vmatpush1.msra.mxu0 0.0
  %366 = vmatprep.subr.mxu0 0.0
  %367 = vmatpush1.msra.mxu0 0.0
  %368 = vmatprep.subr.mxu0 0.0
  %369 = vmatpush1.msra.mxu0 0.0
  %370 = vmatprep.subr.mxu0 0.0
  %371 = vmatpush1.msra.mxu0 0.0
  %372 = vmatprep.subr.mxu0 0.0
  %373 = vmatpush1.msra.mxu0 0.0
  %374 = vmatprep.subr.mxu0 0.0
  %375 = vmatpush1.msra.mxu0 0.0
  %376 = vmatprep.subr.mxu0 0.0
  %377 = vmatpush1.msra.mxu0 0.0
  %378 = vmatprep.subr.mxu0 0.0
  %379 = vmatpush1.msra.mxu0 0.0
  %380 = vmatprep.subr.mxu0 0.0
  %381 = vmatpush1.msra.mxu0 0.0
  %382 = vmatprep.subr.mxu0 0.0
  %383 = vmatpush1.msra.mxu0 0.0
  %384 = vmatprep.subr.mxu0 0.0
  %385 = vmatpush1.msra.mxu0 0.0
  %386 = vmatprep.subr.mxu0 0.0
  %387 = vmatpush1.msra.mxu0 0.0
  %388 = vmatprep.subr.mxu0 0.0
  %389 = vmatpush1.msra.mxu0 0.0
  %390 = vmatprep.subr.mxu0 0.0
  %391 = vmatpush1.msra.mxu0 0.0
  %392 = vmatprep.subr.mxu0 0.0
  %393 = vmatpush1.msra.mxu0 0.0
  %394 = vmatprep.mubr.f32.mxu0 0.0
  %395 = vmatmul.mubr.f32.gmra.mrb[0].mxu0 %v328
  %v396 = vpop.f32.mrb[0].mxu0
  %v397 = vadd.f32 0.0, %v396
  %v398 = vpop.f32.mrb[0].mxu0
  %399 = vdwg.mxu0
  %v401 = vrot.slane %v397, 4
  %v403 = vadd.f32 %v176, %v401
  %v404 = vxor.u32 %v403, 2147483648
  %v405 = vmul.f32 %v404, 1.442695
  %v406 = vpow.pop %v405
  %v407 = vadd.f32 %v406, 1.0
  %v408 = vrcp.pop %v407
  %v409 = vmul.f32 1.0, %v408
  %v410 = vadd.f32 %v397, %v299
  %v412 = vrot.slane %v410, 4
  %413 = vrot.lane.b32.xlu0 %v412, 64
  %v414 = vpop.permute.xlu0 %413
  %v416 = vmul.f32 %v409, %v414
  %418 = vrot.lane.b32.xlu0 %v416, 64
  %v419 = vpop.permute.xlu0 %418
  %v421 = vadd.f32 %v176, %v419
  %v422 = vtanh.pop %v421
  %v423 = vsub.f32 1.0, %v409
  %425 = vrot.lane.b32.xlu0 %v422, 96
  %v426 = vpop.permute.xlu0 %425
  %v428 = vmul.f32 %v423, %v426
  %v429 = vrot.slane %v323, 6
  %v431 = vmul.f32 %v409, %v429
  %v432 = vadd.f32 %v428, %v431
  %v434 = vrot.slane %v432, 4
  %435 = vrot.lane.b32.xlu0 %v434, 96
  %v436 = vpop.permute.xlu0 %435
  %v437 = vsel %vm104, %v436, 0
  %439 = vmatprep.subr.mxu0 0.0
  %440 = vmatpush1.msra.mxu0 %v46
  %441 = vmatprep.subr.mxu0 0.0
  %442 = vmatpush1.msra.mxu0 %v47
  %443 = vmatprep.subr.mxu0 0.0
  %444 = vmatpush1.msra.mxu0 %v48
  %445 = vmatprep.subr.mxu0 0.0
  %446 = vmatpush1.msra.mxu0 %v49
  %447 = vmatprep.subr.mxu0 0.0
  %448 = vmatpush1.msra.mxu0 0.0
  %449 = vmatprep.subr.mxu0 0.0
  %450 = vmatpush1.msra.mxu0 0.0
  %451 = vmatprep.subr.mxu0 0.0
  %452 = vmatpush1.msra.mxu0 0.0
  %453 = vmatprep.subr.mxu0 0.0
  %454 = vmatpush1.msra.mxu0 0.0
  %455 = vmatprep.subr.mxu0 0.0
  %456 = vmatpush1.msra.mxu0 0.0
  %457 = vmatprep.subr.mxu0 0.0
  %458 = vmatpush1.msra.mxu0 0.0
  %459 = vmatprep.subr.mxu0 0.0
  %460 = vmatpush1.msra.mxu0 0.0
  %461 = vmatprep.subr.mxu0 0.0
  %462 = vmatpush1.msra.mxu0 0.0
  %463 = vmatprep.subr.mxu0 0.0
  %464 = vmatpush1.msra.mxu0 0.0
  %465 = vmatprep.subr.mxu0 0.0
  %466 = vmatpush1.msra.mxu0 0.0
  %467 = vmatprep.subr.mxu0 0.0
  %468 = vmatpush1.msra.mxu0 0.0
  %469 = vmatprep.subr.mxu0 0.0
  %470 = vmatpush1.msra.mxu0 0.0
  %471 = vmatprep.subr.mxu0 0.0
  %472 = vmatpush1.msra.mxu0 0.0
  %473 = vmatprep.subr.mxu0 0.0
  %474 = vmatpush1.msra.mxu0 0.0
  %475 = vmatprep.subr.mxu0 0.0
  %476 = vmatpush1.msra.mxu0 0.0
  %477 = vmatprep.subr.mxu0 0.0
  %478 = vmatpush1.msra.mxu0 0.0
  %479 = vmatprep.subr.mxu0 0.0
  %480 = vmatpush1.msra.mxu0 0.0
  %481 = vmatprep.subr.mxu0 0.0
  %482 = vmatpush1.msra.mxu0 0.0
  %483 = vmatprep.subr.mxu0 0.0
  %484 = vmatpush1.msra.mxu0 0.0
  %485 = vmatprep.subr.mxu0 0.0
  %486 = vmatpush1.msra.mxu0 0.0
  %487 = vmatprep.subr.mxu0 0.0
  %488 = vmatpush1.msra.mxu0 0.0
  %489 = vmatprep.subr.mxu0 0.0
  %490 = vmatpush1.msra.mxu0 0.0
  %491 = vmatprep.subr.mxu0 0.0
  %492 = vmatpush1.msra.mxu0 0.0
  %493 = vmatprep.subr.mxu0 0.0
  %494 = vmatpush1.msra.mxu0 0.0
  %495 = vmatprep.subr.mxu0 0.0
  %496 = vmatpush1.msra.mxu0 0.0
  %497 = vmatprep.subr.mxu0 0.0
  %498 = vmatpush1.msra.mxu0 0.0
  %499 = vmatprep.subr.mxu0 0.0
  %500 = vmatpush1.msra.mxu0 0.0
  %501 = vmatprep.subr.mxu0 0.0
  %502 = vmatpush1.msra.mxu0 0.0
  %503 = vmatprep.mubr.f32.mxu0 0.0
  %504 = vmatmul.mubr.f32.gmra.mrb[0].mxu0 %v437
  %v505 = vpop.f32.mrb[0].mxu0
  %v506 = vadd.f32 0.0, %v505
  %v507 = vpop.f32.mrb[0].mxu0
  %508 = vdwg.mxu0
  %v510 = vrot.slane %v506, 2
  %v512 = vadd.f32 %v176, %v510
  %v513 = vxor.u32 %v512, 2147483648
  %v514 = vmul.f32 %v513, 1.442695
  %v515 = vpow.pop %v514
  %v516 = vadd.f32 %v515, 1.0
  %v517 = vrcp.pop %v516
  %v518 = vmul.f32 1.0, %v517
  %v519 = vadd.f32 %v506, %v299
  %v521 = vrot.slane %v519, 2
  %522 = vrot.lane.b32.xlu0 %v521, 64
  %v523 = vpop.permute.xlu0 %522
  %v525 = vmul.f32 %v518, %v523
  %527 = vrot.lane.b32.xlu0 %v525, 64
  %v528 = vpop.permute.xlu0 %527
  %v530 = vadd.f32 %v176, %v528
  %v531 = vtanh.pop %v530
  %v532 = vsub.f32 1.0, %v518
  %534 = vrot.lane.b32.xlu0 %v531, 96
  %v535 = vpop.permute.xlu0 %534
  %v537 = vmul.f32 %v532, %v535
  %v538 = vrot.slane %v432, 6
  %v540 = vmul.f32 %v518, %v538
  %v541 = vadd.f32 %v537, %v540
  %v543 = vrot.slane %v541, 6
  %544 = vrot.lane.b32.xlu0 %v543, 96
  %v545 = vpop.permute.xlu0 %544
  %v546 = vsel %vm104, %v545, 0
  %548 = vmatprep.subr.mxu0 0.0
  %549 = vmatpush1.msra.mxu0 %v46
  %550 = vmatprep.subr.mxu0 0.0
  %551 = vmatpush1.msra.mxu0 %v47
  %552 = vmatprep.subr.mxu0 0.0
  %553 = vmatpush1.msra.mxu0 %v48
  %554 = vmatprep.subr.mxu0 0.0
  %555 = vmatpush1.msra.mxu0 %v49
  %556 = vmatprep.subr.mxu0 0.0
  %557 = vmatpush1.msra.mxu0 0.0
  %558 = vmatprep.subr.mxu0 0.0
  %559 = vmatpush1.msra.mxu0 0.0
  %560 = vmatprep.subr.mxu0 0.0
  %561 = vmatpush1.msra.mxu0 0.0
  %562 = vmatprep.subr.mxu0 0.0
  %563 = vmatpush1.msra.mxu0 0.0
  %564 = vmatprep.subr.mxu0 0.0
  %565 = vmatpush1.msra.mxu0 0.0
  %566 = vmatprep.subr.mxu0 0.0
  %567 = vmatpush1.msra.mxu0 0.0
  %568 = vmatprep.subr.mxu0 0.0
  %569 = vmatpush1.msra.mxu0 0.0
  %570 = vmatprep.subr.mxu0 0.0
  %571 = vmatpush1.msra.mxu0 0.0
  %572 = vmatprep.subr.mxu0 0.0
  %573 = vmatpush1.msra.mxu0 0.0
  %574 = vmatprep.subr.mxu0 0.0
  %575 = vmatpush1.msra.mxu0 0.0
  %576 = vmatprep.subr.mxu0 0.0
  %577 = vmatpush1.msra.mxu0 0.0
  %578 = vmatprep.subr.mxu0 0.0
  %579 = vmatpush1.msra.mxu0 0.0
  %580 = vmatprep.subr.mxu0 0.0
  %581 = vmatpush1.msra.mxu0 0.0
  %582 = vmatprep.subr.mxu0 0.0
  %583 = vmatpush1.msra.mxu0 0.0
  %584 = vmatprep.subr.mxu0 0.0
  %585 = vmatpush1.msra.mxu0 0.0
  %586 = vmatprep.subr.mxu0 0.0
  %587 = vmatpush1.msra.mxu0 0.0
  %588 = vmatprep.subr.mxu0 0.0
  %589 = vmatpush1.msra.mxu0 0.0
  %590 = vmatprep.subr.mxu0 0.0
  %591 = vmatpush1.msra.mxu0 0.0
  %592 = vmatprep.subr.mxu0 0.0
  %593 = vmatpush1.msra.mxu0 0.0
  %594 = vmatprep.subr.mxu0 0.0
  %595 = vmatpush1.msra.mxu0 0.0
  %596 = vmatprep.subr.mxu0 0.0
  %597 = vmatpush1.msra.mxu0 0.0
  %598 = vmatprep.subr.mxu0 0.0
  %599 = vmatpush1.msra.mxu0 0.0
  %600 = vmatprep.subr.mxu0 0.0
  %601 = vmatpush1.msra.mxu0 0.0
  %602 = vmatprep.subr.mxu0 0.0
  %603 = vmatpush1.msra.mxu0 0.0
  %604 = vmatprep.subr.mxu0 0.0
  %605 = vmatpush1.msra.mxu0 0.0
  %606 = vmatprep.subr.mxu0 0.0
  %607 = vmatpush1.msra.mxu0 0.0
  %608 = vmatprep.subr.mxu0 0.0
  %609 = vmatpush1.msra.mxu0 0.0
  %610 = vmatprep.subr.mxu0 0.0
  %611 = vmatpush1.msra.mxu0 0.0
  %612 = vmatprep.mubr.f32.mxu0 0.0
  %613 = vmatmul.mubr.f32.gmra.mrb[0].mxu0 %v546
  %v614 = vpop.f32.mrb[0].mxu0
  %v615 = vadd.f32 0.0, %v614
  %v616 = vpop.f32.mrb[0].mxu0
  %617 = vdwg.mxu0
  %v618 = vadd.f32 %v181, %v615
  %v619 = vxor.u32 %v618, 2147483648
  %v620 = vmul.f32 %v619, 1.442695
  %v621 = vpow.pop %v620
  %v622 = vadd.f32 %v621, 1.0
  %v623 = vrcp.pop %v622
  %v624 = vmul.f32 1.0, %v623
  %v625 = vadd.f32 %v615, %v299
  %627 = vrot.lane.b32.xlu0 %v625, 64
  %v628 = vpop.permute.xlu0 %627
  %v630 = vmul.f32 %v624, %v628
  %632 = vrot.lane.b32.xlu0 %v630, 64
  %v633 = vpop.permute.xlu0 %632
  %v635 = vadd.f32 %v181, %v633
  %v636 = vtanh.pop %v635
  %v637 = vsub.f32 1.0, %v624
  %639 = vrot.lane.b32.xlu0 %v636, 96
  %v640 = vpop.permute.xlu0 %639
  %v642 = vmul.f32 %v637, %v640
  %v644 = vmul.f32 %v624, %v543
  %v645 = vadd.f32 %v642, %v644
  %647 = vrot.lane.b32.xlu0 %v645, 96
  %v648 = vpop.permute.xlu0 %647
  %v649 = vsel %vm104, %v648, 0
  %651 = vmatprep.subr.mxu0 0.0
  %652 = vmatpush1.msra.mxu0 %v46
  %653 = vmatprep.subr.mxu0 0.0
  %654 = vmatpush1.msra.mxu0 %v47
  %655 = vmatprep.subr.mxu0 0.0
  %656 = vmatpush1.msra.mxu0 %v48
  %657 = vmatprep.subr.mxu0 0.0
  %658 = vmatpush1.msra.mxu0 %v49
  %659 = vmatprep.subr.mxu0 0.0
  %660 = vmatpush1.msra.mxu0 0.0
  %661 = vmatprep.subr.mxu0 0.0
  %662 = vmatpush1.msra.mxu0 0.0
  %663 = vmatprep.subr.mxu0 0.0
  %664 = vmatpush1.msra.mxu0 0.0
  %665 = vmatprep.subr.mxu0 0.0
  %666 = vmatpush1.msra.mxu0 0.0
  %667 = vmatprep.subr.mxu0 0.0
  %668 = vmatpush1.msra.mxu0 0.0
  %669 = vmatprep.subr.mxu0 0.0
  %670 = vmatpush1.msra.mxu0 0.0
  %671 = vmatprep.subr.mxu0 0.0
  %672 = vmatpush1.msra.mxu0 0.0
  %673 = vmatprep.subr.mxu0 0.0
  %674 = vmatpush1.msra.mxu0 0.0
  %675 = vmatprep.subr.mxu0 0.0
  %676 = vmatpush1.msra.mxu0 0.0
  %677 = vmatprep.subr.mxu0 0.0
  %678 = vmatpush1.msra.mxu0 0.0
  %679 = vmatprep.subr.mxu0 0.0
  %680 = vmatpush1.msra.mxu0 0.0
  %681 = vmatprep.subr.mxu0 0.0
  %682 = vmatpush1.msra.mxu0 0.0
  %683 = vmatprep.subr.mxu0 0.0
  %684 = vmatpush1.msra.mxu0 0.0
  %685 = vmatprep.subr.mxu0 0.0
  %686 = vmatpush1.msra.mxu0 0.0
  %687 = vmatprep.subr.mxu0 0.0
  %688 = vmatpush1.msra.mxu0 0.0
  %689 = vmatprep.subr.mxu0 0.0
  %690 = vmatpush1.msra.mxu0 0.0
  %691 = vmatprep.subr.mxu0 0.0
  %692 = vmatpush1.msra.mxu0 0.0
  %693 = vmatprep.subr.mxu0 0.0
  %694 = vmatpush1.msra.mxu0 0.0
  %695 = vmatprep.subr.mxu0 0.0
  %696 = vmatpush1.msra.mxu0 0.0
  %697 = vmatprep.subr.mxu0 0.0
  %698 = vmatpush1.msra.mxu0 0.0
  %699 = vmatprep.subr.mxu0 0.0
  %700 = vmatpush1.msra.mxu0 0.0
  %701 = vmatprep.subr.mxu0 0.0
  %702 = vmatpush1.msra.mxu0 0.0
  %703 = vmatprep.subr.mxu0 0.0
  %704 = vmatpush1.msra.mxu0 0.0
  %705 = vmatprep.subr.mxu0 0.0
  %706 = vmatpush1.msra.mxu0 0.0
  %707 = vmatprep.subr.mxu0 0.0
  %708 = vmatpush1.msra.mxu0 0.0
  %709 = vmatprep.subr.mxu0 0.0
  %710 = vmatpush1.msra.mxu0 0.0
  %711 = vmatprep.subr.mxu0 0.0
  %712 = vmatpush1.msra.mxu0 0.0
  %713 = vmatprep.subr.mxu0 0.0
  %714 = vmatpush1.msra.mxu0 0.0
  %715 = vmatprep.mubr.f32.mxu0 0.0
  %716 = vmatmul.mubr.f32.gmra.mrb[0].mxu0 %v649
  %v717 = vpop.f32.mrb[0].mxu0
  %v718 = vadd.f32 0.0, %v717
  %v719 = vpop.f32.mrb[0].mxu0
  %720 = vdwg.mxu0
  %v722 = vrot.slane %v718, 6
  %v724 = vadd.f32 %v181, %v722
  %v725 = vxor.u32 %v724, 2147483648
  %v726 = vmul.f32 %v725, 1.442695
  %v727 = vpow.pop %v726
  %v728 = vadd.f32 %v727, 1.0
  %v729 = vrcp.pop %v728
  %v730 = vmul.f32 1.0, %v729
  %v731 = vadd.f32 %v718, %v299
  %v733 = vrot.slane %v731, 6
  %734 = vrot.lane.b32.xlu0 %v733, 64
  %v735 = vpop.permute.xlu0 %734
  %v737 = vmul.f32 %v730, %v735
  %739 = vrot.lane.b32.xlu0 %v737, 64
  %v740 = vpop.permute.xlu0 %739
  %v742 = vadd.f32 %v181, %v740
  %v743 = vtanh.pop %v742
  %v744 = vsub.f32 1.0, %v730
  %746 = vrot.lane.b32.xlu0 %v743, 96
  %v747 = vpop.permute.xlu0 %746
  %v749 = vmul.f32 %v744, %v747
  %v750 = vrot.slane %v645, 6
  %v752 = vmul.f32 %v730, %v750
  %v753 = vadd.f32 %v749, %v752
  %v755 = vrot.slane %v753, 2
  %756 = vrot.lane.b32.xlu0 %v755, 96
  %v757 = vpop.permute.xlu0 %756
  %v758 = vsel %vm104, %v757, 0
  %760 = vmatprep.subr.mxu0 0.0
  %761 = vmatpush1.msra.mxu0 %v46
  %762 = vmatprep.subr.mxu0 0.0
  %763 = vmatpush1.msra.mxu0 %v47
  %764 = vmatprep.subr.mxu0 0.0
  %765 = vmatpush1.msra.mxu0 %v48
  %766 = vmatprep.subr.mxu0 0.0
  %767 = vmatpush1.msra.mxu0 %v49
  %768 = vmatprep.subr.mxu0 0.0
  %769 = vmatpush1.msra.mxu0 0.0
  %770 = vmatprep.subr.mxu0 0.0
  %771 = vmatpush1.msra.mxu0 0.0
  %772 = vmatprep.subr.mxu0 0.0
  %773 = vmatpush1.msra.mxu0 0.0
  %774 = vmatprep.subr.mxu0 0.0
  %775 = vmatpush1.msra.mxu0 0.0
  %776 = vmatprep.subr.mxu0 0.0
  %777 = vmatpush1.msra.mxu0 0.0
  %778 = vmatprep.subr.mxu0 0.0
  %779 = vmatpush1.msra.mxu0 0.0
  %780 = vmatprep.subr.mxu0 0.0
  %781 = vmatpush1.msra.mxu0 0.0
  %782 = vmatprep.subr.mxu0 0.0
  %783 = vmatpush1.msra.mxu0 0.0
  %784 = vmatprep.subr.mxu0 0.0
  %785 = vmatpush1.msra.mxu0 0.0
  %786 = vmatprep.subr.mxu0 0.0
  %787 = vmatpush1.msra.mxu0 0.0
  %788 = vmatprep.subr.mxu0 0.0
  %789 = vmatpush1.msra.mxu0 0.0
  %790 = vmatprep.subr.mxu0 0.0
  %791 = vmatpush1.msra.mxu0 0.0
  %792 = vmatprep.subr.mxu0 0.0
  %793 = vmatpush1.msra.mxu0 0.0
  %794 = vmatprep.subr.mxu0 0.0
  %795 = vmatpush1.msra.mxu0 0.0
  %796 = vmatprep.subr.mxu0 0.0
  %797 = vmatpush1.msra.mxu0 0.0
  %798 = vmatprep.subr.mxu0 0.0
  %799 = vmatpush1.msra.mxu0 0.0
  %800 = vmatprep.subr.mxu0 0.0
  %801 = vmatpush1.msra.mxu0 0.0
  %802 = vmatprep.subr.mxu0 0.0
  %803 = vmatpush1.msra.mxu0 0.0
  %804 = vmatprep.subr.mxu0 0.0
  %805 = vmatpush1.msra.mxu0 0.0
  %806 = vmatprep.subr.mxu0 0.0
  %807 = vmatpush1.msra.mxu0 0.0
  %808 = vmatprep.subr.mxu0 0.0
  %809 = vmatpush1.msra.mxu0 0.0
  %810 = vmatprep.subr.mxu0 0.0
  %811 = vmatpush1.msra.mxu0 0.0
  %812 = vmatprep.subr.mxu0 0.0
  %813 = vmatpush1.msra.mxu0 0.0
  %814 = vmatprep.subr.mxu0 0.0
  %815 = vmatpush1.msra.mxu0 0.0
  %816 = vmatprep.subr.mxu0 0.0
  %817 = vmatpush1.msra.mxu0 0.0
  %818 = vmatprep.subr.mxu0 0.0
  %819 = vmatpush1.msra.mxu0 0.0
  %820 = vmatprep.subr.mxu0 0.0
  %821 = vmatpush1.msra.mxu0 0.0
  %822 = vmatprep.subr.mxu0 0.0
  %823 = vmatpush1.msra.mxu0 0.0
  %824 = vmatprep.mubr.f32.mxu0 0.0
  %825 = vmatmul.mubr.f32.gmra.mrb[0].mxu0 %v758
  %v826 = vpop.f32.mrb[0].mxu0
  %v827 = vadd.f32 0.0, %v826
  %v828 = vpop.f32.mrb[0].mxu0
  %829 = vdwg.mxu0
  %v831 = vrot.slane %v827, 4
  %v833 = vadd.f32 %v181, %v831
  %v834 = vxor.u32 %v833, 2147483648
  %v835 = vmul.f32 %v834, 1.442695
  %v836 = vpow.pop %v835
  %v837 = vadd.f32 %v836, 1.0
  %v838 = vrcp.pop %v837
  %v839 = vmul.f32 1.0, %v838
  %v840 = vadd.f32 %v827, %v299
  %v842 = vrot.slane %v840, 4
  %843 = vrot.lane.b32.xlu0 %v842, 64
  %v844 = vpop.permute.xlu0 %843
  %v846 = vmul.f32 %v839, %v844
  %848 = vrot.lane.b32.xlu0 %v846, 64
  %v849 = vpop.permute.xlu0 %848
  %v851 = vadd.f32 %v181, %v849
  %v852 = vtanh.pop %v851
  %v853 = vsub.f32 1.0, %v839
  %855 = vrot.lane.b32.xlu0 %v852, 96
  %v856 = vpop.permute.xlu0 %855
  %v858 = vmul.f32 %v853, %v856
  %v859 = vrot.slane %v753, 6
  %v861 = vmul.f32 %v839, %v859
  %v862 = vadd.f32 %v858, %v861
  %v864 = vrot.slane %v862, 4
  %865 = vrot.lane.b32.xlu0 %v864, 96
  %v866 = vpop.permute.xlu0 %865
  %v867 = vsel %vm104, %v866, 0
  %869 = vmatprep.subr.mxu0 0.0
  %870 = vmatpush1.msra.mxu0 %v46
  %871 = vmatprep.subr.mxu0 0.0
  %872 = vmatpush1.msra.mxu0 %v47
  %873 = vmatprep.subr.mxu0 0.0
  %874 = vmatpush1.msra.mxu0 %v48
  %875 = vmatprep.subr.mxu0 0.0
  %876 = vmatpush1.msra.mxu0 %v49
  %877 = vmatprep.subr.mxu0 0.0
  %878 = vmatpush1.msra.mxu0 0.0
  %879 = vmatprep.subr.mxu0 0.0
  %880 = vmatpush1.msra.mxu0 0.0
  %881 = vmatprep.subr.mxu0 0.0
  %882 = vmatpush1.msra.mxu0 0.0
  %883 = vmatprep.subr.mxu0 0.0
  %884 = vmatpush1.msra.mxu0 0.0
  %885 = vmatprep.subr.mxu0 0.0
  %886 = vmatpush1.msra.mxu0 0.0
  %887 = vmatprep.subr.mxu0 0.0
  %888 = vmatpush1.msra.mxu0 0.0
  %889 = vmatprep.subr.mxu0 0.0
  %890 = vmatpush1.msra.mxu0 0.0
  %891 = vmatprep.subr.mxu0 0.0
  %892 = vmatpush1.msra.mxu0 0.0
  %893 = vmatprep.subr.mxu0 0.0
  %894 = vmatpush1.msra.mxu0 0.0
  %895 = vmatprep.subr.mxu0 0.0
  %896 = vmatpush1.msra.mxu0 0.0
  %897 = vmatprep.subr.mxu0 0.0
  %898 = vmatpush1.msra.mxu0 0.0
  %899 = vmatprep.subr.mxu0 0.0
  %900 = vmatpush1.msra.mxu0 0.0
  %901 = vmatprep.subr.mxu0 0.0
  %902 = vmatpush1.msra.mxu0 0.0
  %903 = vmatprep.subr.mxu0 0.0
  %904 = vmatpush1.msra.mxu0 0.0
  %905 = vmatprep.subr.mxu0 0.0
  %906 = vmatpush1.msra.mxu0 0.0
  %907 = vmatprep.subr.mxu0 0.0
  %908 = vmatpush1.msra.mxu0 0.0
  %909 = vmatprep.subr.mxu0 0.0
  %910 = vmatpush1.msra.mxu0 0.0
  %911 = vmatprep.subr.mxu0 0.0
  %912 = vmatpush1.msra.mxu0 0.0
  %913 = vmatprep.subr.mxu0 0.0
  %914 = vmatpush1.msra.mxu0 0.0
  %915 = vmatprep.subr.mxu0 0.0
  %916 = vmatpush1.msra.mxu0 0.0
  %917 = vmatprep.subr.mxu0 0.0
  %918 = vmatpush1.msra.mxu0 0.0
  %919 = vmatprep.subr.mxu0 0.0
  %920 = vmatpush1.msra.mxu0 0.0
  %921 = vmatprep.subr.mxu0 0.0
  %922 = vmatpush1.msra.mxu0 0.0
  %923 = vmatprep.subr.mxu0 0.0
  %924 = vmatpush1.msra.mxu0 0.0
  %925 = vmatprep.subr.mxu0 0.0
  %926 = vmatpush1.msra.mxu0 0.0
  %927 = vmatprep.subr.mxu0 0.0
  %928 = vmatpush1.msra.mxu0 0.0
  %929 = vmatprep.subr.mxu0 0.0
  %930 = vmatpush1.msra.mxu0 0.0
  %931 = vmatprep.subr.mxu0 0.0
  %932 = vmatpush1.msra.mxu0 0.0
  %933 = vmatprep.mubr.f32.mxu0 0.0
  %934 = vmatmul.mubr.f32.gmra.mrb[0].mxu0 %v867
  %v935 = vpop.f32.mrb[0].mxu0
  %v936 = vadd.f32 0.0, %v935
  %v937 = vpop.f32.mrb[0].mxu0
  %938 = vdwg.mxu0
  %v940 = vrot.slane %v936, 2
  %v942 = vadd.f32 %v181, %v940
  %v943 = vxor.u32 %v942, 2147483648
  %v944 = vmul.f32 %v943, 1.442695
  %v945 = vpow.pop %v944
  %v946 = vadd.f32 %v945, 1.0
  %v947 = vrcp.pop %v946
  %v948 = vmul.f32 1.0, %v947
  %v949 = vadd.f32 %v936, %v299
  %v951 = vrot.slane %v949, 2
  %952 = vrot.lane.b32.xlu0 %v951, 64
  %v953 = vpop.permute.xlu0 %952
  %v955 = vmul.f32 %v948, %v953
  %957 = vrot.lane.b32.xlu0 %v955, 64
  %v958 = vpop.permute.xlu0 %957
  %v960 = vadd.f32 %v181, %v958
  %v961 = vtanh.pop %v960
  %v962 = vsub.f32 1.0, %v948
  %964 = vrot.lane.b32.xlu0 %v961, 96
  %v965 = vpop.permute.xlu0 %964
  %v967 = vmul.f32 %v962, %v965
  %v968 = vrot.slane %v862, 6
  %v970 = vmul.f32 %v948, %v968
  %v971 = vadd.f32 %v967, %v970
  %vm972 = vcmask 1041408
  %v973 = vsel %vm972, %v212, %v323
  %vm974 = vcmask 1043456
  %v975 = vsel %vm974, %v973, %v432
  %vm976 = vcmask 1045504
  %v977 = vsel %vm976, %v975, %v541
  %v978 = vsel %vm972, %v645, %v753
  %v979 = vsel %vm974, %v978, %v862
  %v980 = vsel %vm976, %v979, %v971
  %v981 = vld [vmem:[%s6] sm:$0xff]
  %v982 = vld [vmem:[%s6 + $0x8] sm:$0xff]
  %v983 = vld [vmem:[%s6 + $0x10] sm:$0xff]
  %v984 = vld [vmem:[%s6 + $0x18] sm:$0xff]
  %v985 = vld [vmem:[%s8] sm:$0x1]
  %v986 = vld [vmem:[%s5] sm:$0xff]
  %v987 = vld [vmem:[%s5 + $0x8] sm:$0xff]
  %v988 = vld [vmem:[%s5 + $0x10] sm:$0xff]
  %v989 = vld [vmem:[%s5 + $0x18] sm:$0xff]
  %v990 = vld [vmem:[%s7] sm:$0x1]
  %v992 = vlaneseq
  %v993 = vshrl.u32 %v992, 7
  %v994 = vsub.s32 0, %v993
  %v995 = vrot.slane %v990, %v994
  %999 = vrot.lane.b32.xlu0 %v977, 96
  %v1000 = vpop.permute.xlu0 %999
  %1001 = vrot.lane.b32.xlu0 %v980, 96
  %v1002 = vpop.permute.xlu0 %1001
  %v1003 = vsel %vm104, %v1000, 0
  %v1005 = vsel %vm104, %v1002, 0
  %1007 = vmatprep.subr.mxu0 0.0
  %1008 = vmatpush1.msra.mxu0 %v986
  %1009 = vmatprep.subr.mxu0 0.0
  %1010 = vmatpush1.msra.mxu0 %v987
  %1011 = vmatprep.subr.mxu0 0.0
  %1012 = vmatpush1.msra.mxu0 %v988
  %1013 = vmatprep.subr.mxu0 0.0
  %1014 = vmatpush1.msra.mxu0 %v989
  %1015 = vmatprep.subr.mxu0 0.0
  %1016 = vmatpush1.msra.mxu0 0.0
  %1017 = vmatprep.subr.mxu0 0.0
  %1018 = vmatpush1.msra.mxu0 0.0
  %1019 = vmatprep.subr.mxu0 0.0
  %1020 = vmatpush1.msra.mxu0 0.0
  %1021 = vmatprep.subr.mxu0 0.0
  %1022 = vmatpush1.msra.mxu0 0.0
  %1023 = vmatprep.subr.mxu0 0.0
  %1024 = vmatpush1.msra.mxu0 0.0
  %1025 = vmatprep.subr.mxu0 0.0
  %1026 = vmatpush1.msra.mxu0 0.0
  %1027 = vmatprep.subr.mxu0 0.0
  %1028 = vmatpush1.msra.mxu0 0.0
  %1029 = vmatprep.subr.mxu0 0.0
  %1030 = vmatpush1.msra.mxu0 0.0
  %1031 = vmatprep.subr.mxu0 0.0
  %1032 = vmatpush1.msra.mxu0 0.0
  %1033 = vmatprep.subr.mxu0 0.0
  %1034 = vmatpush1.msra.mxu0 0.0
  %1035 = vmatprep.subr.mxu0 0.0
  %1036 = vmatpush1.msra.mxu0 0.0
  %1037 = vmatprep.subr.mxu0 0.0
  %1038 = vmatpush1.msra.mxu0 0.0
  %1039 = vmatprep.subr.mxu0 0.0
  %1040 = vmatpush1.msra.mxu0 0.0
  %1041 = vmatprep.subr.mxu0 0.0
  %1042 = vmatpush1.msra.mxu0 0.0
  %1043 = vmatprep.subr.mxu0 0.0
  %1044 = vmatpush1.msra.mxu0 0.0
  %1045 = vmatprep.subr.mxu0 0.0
  %1046 = vmatpush1.msra.mxu0 0.0
  %1047 = vmatprep.subr.mxu0 0.0
  %1048 = vmatpush1.msra.mxu0 0.0
  %1049 = vmatprep.subr.mxu0 0.0
  %1050 = vmatpush1.msra.mxu0 0.0
  %1051 = vmatprep.subr.mxu0 0.0
  %1052 = vmatpush1.msra.mxu0 0.0
  %1053 = vmatprep.subr.mxu0 0.0
  %1054 = vmatpush1.msra.mxu0 0.0
  %1055 = vmatprep.subr.mxu0 0.0
  %1056 = vmatpush1.msra.mxu0 0.0
  %1057 = vmatprep.subr.mxu0 0.0
  %1058 = vmatpush1.msra.mxu0 0.0
  %1059 = vmatprep.subr.mxu0 0.0
  %1060 = vmatpush1.msra.mxu0 0.0
  %1061 = vmatprep.subr.mxu0 0.0
  %1062 = vmatpush1.msra.mxu0 0.0
  %1063 = vmatprep.subr.mxu0 0.0
  %1064 = vmatpush1.msra.mxu0 0.0
  %1065 = vmatprep.subr.mxu0 0.0
  %1066 = vmatpush1.msra.mxu0 0.0
  %1067 = vmatprep.subr.mxu0 0.0
  %1068 = vmatpush1.msra.mxu0 0.0
  %1069 = vmatprep.subr.mxu0 0.0
  %1070 = vmatpush1.msra.mxu0 0.0
  %1071 = vmatprep.mubr.f32.mxu0 0.0
  %1072 = vmatmul.mubr.f32.gmra.mrb[0].mxu0 %v1003
  %v1073 = vpop.f32.mrb[0].mxu0
  %v1074 = vadd.f32 %v995, %v1073
  %v1075 = vpop.f32.mrb[0].mxu0
  %1076 = vmatprep.mubr.f32.mxu0 0.0
  %1077 = vmatmul.mubr.f32.gmra.mrb[0].mxu0 %v1005
  %v1078 = vpop.f32.mrb[0].mxu0
  %v1079 = vadd.f32 %v995, %v1078
  %v1080 = vpop.f32.mrb[0].mxu0
  %1081 = vdwg.mxu0
  %v1082 = vadd.f32 %v1074, 0.0
  %v1083 = vxor.u32 %v1082, 2147483648
  %v1084 = vmul.f32 %v1083, 1.442695
  %v1085 = vpow.pop %v1084
  %v1086 = vadd.f32 %v1085, 1.0
  %v1087 = vrcp.pop %v1086
  %v1088 = vmul.f32 1.0, %v1087
  %v1090 = vlaneseq
  %v1091 = vshrl.u32 %v1090, 7
  %v1092 = vsub.s32 0, %v1091
  %v1093 = vrot.slane %v985, %v1092
  %v1095 = vadd.f32 %v1093, 0.0
  %v1096 = vmul.f32 %v1088, %v1095
  %1098 = vrot.lane.b32.xlu0 %v1096, 64
  %v1099 = vpop.permute.xlu0 %1098
  %v1101 = vadd.f32 %v1074, %v1099
  %v1102 = vtanh.pop %v1101
  %v1103 = vsub.f32 1.0, %v1088
  %1105 = vrot.lane.b32.xlu0 %v1102, 96
  %v1106 = vpop.permute.xlu0 %1105
  %v1108 = vmul.f32 %v1103, %v1106
  %v1109 = vmul.f32 %v1088, 0.0
  %v1110 = vadd.f32 %v1108, %v1109
  %1112 = vrot.lane.b32.xlu0 %v1110, 96
  %v1113 = vpop.permute.xlu0 %1112
  %v1114 = vsel %vm104, %v1113, 0
  %1116 = vmatprep.subr.mxu0 0.0
  %1117 = vmatpush1.msra.mxu0 %v981
  %1118 = vmatprep.subr.mxu0 0.0
  %1119 = vmatpush1.msra.mxu0 %v982
  %1120 = vmatprep.subr.mxu0 0.0
  %1121 = vmatpush1.msra.mxu0 %v983
  %1122 = vmatprep.subr.mxu0 0.0
  %1123 = vmatpush1.msra.mxu0 %v984
  %1124 = vmatprep.subr.mxu0 0.0
  %1125 = vmatpush1.msra.mxu0 0.0
  %1126 = vmatprep.subr.mxu0 0.0
  %1127 = vmatpush1.msra.mxu0 0.0
  %1128 = vmatprep.subr.mxu0 0.0
  %1129 = vmatpush1.msra.mxu0 0.0
  %1130 = vmatprep.subr.mxu0 0.0
  %1131 = vmatpush1.msra.mxu0 0.0
  %1132 = vmatprep.subr.mxu0 0.0
  %1133 = vmatpush1.msra.mxu0 0.0
  %1134 = vmatprep.subr.mxu0 0.0
  %1135 = vmatpush1.msra.mxu0 0.0
  %1136 = vmatprep.subr.mxu0 0.0
  %1137 = vmatpush1.msra.mxu0 0.0
  %1138 = vmatprep.subr.mxu0 0.0
  %1139 = vmatpush1.msra.mxu0 0.0
  %1140 = vmatprep.subr.mxu0 0.0
  %1141 = vmatpush1.msra.mxu0 0.0
  %1142 = vmatprep.subr.mxu0 0.0
  %1143 = vmatpush1.msra.mxu0 0.0
  %1144 = vmatprep.subr.mxu0 0.0
  %1145 = vmatpush1.msra.mxu0 0.0
  %1146 = vmatprep.subr.mxu0 0.0
  %1147 = vmatpush1.msra.mxu0 0.0
  %1148 = vmatprep.subr.mxu0 0.0
  %1149 = vmatpush1.msra.mxu0 0.0
  %1150 = vmatprep.subr.mxu0 0.0
  %1151 = vmatpush1.msra.mxu0 0.0
  %1152 = vmatprep.subr.mxu0 0.0
  %1153 = vmatpush1.msra.mxu0 0.0
  %1154 = vmatprep.subr.mxu0 0.0
  %1155 = vmatpush1.msra.mxu0 0.0
  %1156 = vmatprep.subr.mxu0 0.0
  %1157 = vmatpush1.msra.mxu0 0.0
  %1158 = vmatprep.subr.mxu0 0.0
  %1159 = vmatpush1.msra.mxu0 0.0
  %1160 = vmatprep.subr.mxu0 0.0
  %1161 = vmatpush1.msra.mxu0 0.0
  %1162 = vmatprep.subr.mxu0 0.0
  %1163 = vmatpush1.msra.mxu0 0.0
  %1164 = vmatprep.subr.mxu0 0.0
  %1165 = vmatpush1.msra.mxu0 0.0
  %1166 = vmatprep.subr.mxu0 0.0
  %1167 = vmatpush1.msra.mxu0 0.0
  %1168 = vmatprep.subr.mxu0 0.0
  %1169 = vmatpush1.msra.mxu0 0.0
  %1170 = vmatprep.subr.mxu0 0.0
  %1171 = vmatpush1.msra.mxu0 0.0
  %1172 = vmatprep.subr.mxu0 0.0
  %1173 = vmatpush1.msra.mxu0 0.0
  %1174 = vmatprep.subr.mxu0 0.0
  %1175 = vmatpush1.msra.mxu0 0.0
  %1176 = vmatprep.subr.mxu0 0.0
  %1177 = vmatpush1.msra.mxu0 0.0
  %1178 = vmatprep.subr.mxu0 0.0
  %1179 = vmatpush1.msra.mxu0 0.0
  %1180 = vmatprep.mubr.f32.mxu0 0.0
  %1181 = vmatmul.mubr.f32.gmra.mrb[0].mxu0 %v1114
  %v1182 = vpop.f32.mrb[0].mxu0
  %v1183 = vadd.f32 0.0, %v1182
  %v1184 = vpop.f32.mrb[0].mxu0
  %1185 = vdwg.mxu0
  %v1187 = vrot.slane %v1183, 6
  %v1189 = vadd.f32 %v1074, %v1187
  %v1190 = vxor.u32 %v1189, 2147483648
  %v1191 = vmul.f32 %v1190, 1.442695
  %v1192 = vpow.pop %v1191
  %v1193 = vadd.f32 %v1192, 1.0
  %v1194 = vrcp.pop %v1193
  %v1195 = vmul.f32 1.0, %v1194
  %1196 = vrot.lane.b32.xlu0 %v1093, 64
  %v1197 = vpop.permute.xlu0 %1196
  %v1199 = vadd.f32 %v1183, %v1197
  %v1201 = vrot.slane %v1199, 6
  %1202 = vrot.lane.b32.xlu0 %v1201, 64
  %v1203 = vpop.permute.xlu0 %1202
  %v1205 = vmul.f32 %v1195, %v1203
  %1207 = vrot.lane.b32.xlu0 %v1205, 64
  %v1208 = vpop.permute.xlu0 %1207
  %v1210 = vadd.f32 %v1074, %v1208
  %v1211 = vtanh.pop %v1210
  %v1212 = vsub.f32 1.0, %v1195
  %1214 = vrot.lane.b32.xlu0 %v1211, 96
  %v1215 = vpop.permute.xlu0 %1214
  %v1217 = vmul.f32 %v1212, %v1215
  %v1218 = vrot.slane %v1110, 6
  %v1220 = vmul.f32 %v1195, %v1218
  %v1221 = vadd.f32 %v1217, %v1220
  %v1223 = vrot.slane %v1221, 2
  %1224 = vrot.lane.b32.xlu0 %v1223, 96
  %v1225 = vpop.permute.xlu0 %1224
  %v1226 = vsel %vm104, %v1225, 0
  %1228 = vmatprep.subr.mxu0 0.0
  %1229 = vmatpush1.msra.mxu0 %v981
  %1230 = vmatprep.subr.mxu0 0.0
  %1231 = vmatpush1.msra.mxu0 %v982
  %1232 = vmatprep.subr.mxu0 0.0
  %1233 = vmatpush1.msra.mxu0 %v983
  %1234 = vmatprep.subr.mxu0 0.0
  %1235 = vmatpush1.msra.mxu0 %v984
  %1236 = vmatprep.subr.mxu0 0.0
  %1237 = vmatpush1.msra.mxu0 0.0
  %1238 = vmatprep.subr.mxu0 0.0
  %1239 = vmatpush1.msra.mxu0 0.0
  %1240 = vmatprep.subr.mxu0 0.0
  %1241 = vmatpush1.msra.mxu0 0.0
  %1242 = vmatprep.subr.mxu0 0.0
  %1243 = vmatpush1.msra.mxu0 0.0
  %1244 = vmatprep.subr.mxu0 0.0
  %1245 = vmatpush1.msra.mxu0 0.0
  %1246 = vmatprep.subr.mxu0 0.0
  %1247 = vmatpush1.msra.mxu0 0.0
  %1248 = vmatprep.subr.mxu0 0.0
  %1249 = vmatpush1.msra.mxu0 0.0
  %1250 = vmatprep.subr.mxu0 0.0
  %1251 = vmatpush1.msra.mxu0 0.0
  %1252 = vmatprep.subr.mxu0 0.0
  %1253 = vmatpush1.msra.mxu0 0.0
  %1254 = vmatprep.subr.mxu0 0.0
  %1255 = vmatpush1.msra.mxu0 0.0
  %1256 = vmatprep.subr.mxu0 0.0
  %1257 = vmatpush1.msra.mxu0 0.0
  %1258 = vmatprep.subr.mxu0 0.0
  %1259 = vmatpush1.msra.mxu0 0.0
  %1260 = vmatprep.subr.mxu0 0.0
  %1261 = vmatpush1.msra.mxu0 0.0
  %1262 = vmatprep.subr.mxu0 0.0
  %1263 = vmatpush1.msra.mxu0 0.0
  %1264 = vmatprep.subr.mxu0 0.0
  %1265 = vmatpush1.msra.mxu0 0.0
  %1266 = vmatprep.subr.mxu0 0.0
  %1267 = vmatpush1.msra.mxu0 0.0
  %1268 = vmatprep.subr.mxu0 0.0
  %1269 = vmatpush1.msra.mxu0 0.0
  %1270 = vmatprep.subr.mxu0 0.0
  %1271 = vmatpush1.msra.mxu0 0.0
  %1272 = vmatprep.subr.mxu0 0.0
  %1273 = vmatpush1.msra.mxu0 0.0
  %1274 = vmatprep.subr.mxu0 0.0
  %1275 = vmatpush1.msra.mxu0 0.0
  %1276 = vmatprep.subr.mxu0 0.0
  %1277 = vmatpush1.msra.mxu0 0.0
  %1278 = vmatprep.subr.mxu0 0.0
  %1279 = vmatpush1.msra.mxu0 0.0
  %1280 = vmatprep.subr.mxu0 0.0
  %1281 = vmatpush1.msra.mxu0 0.0
  %1282 = vmatprep.subr.mxu0 0.0
  %1283 = vmatpush1.msra.mxu0 0.0
  %1284 = vmatprep.subr.mxu0 0.0
  %1285 = vmatpush1.msra.mxu0 0.0
  %1286 = vmatprep.subr.mxu0 0.0
  %1287 = vmatpush1.msra.mxu0 0.0
  %1288 = vmatprep.subr.mxu0 0.0
  %1289 = vmatpush1.msra.mxu0 0.0
  %1290 = vmatprep.subr.mxu0 0.0
  %1291 = vmatpush1.msra.mxu0 0.0
  %1292 = vmatprep.mubr.f32.mxu0 0.0
  %1293 = vmatmul.mubr.f32.gmra.mrb[0].mxu0 %v1226
  %v1294 = vpop.f32.mrb[0].mxu0
  %v1295 = vadd.f32 0.0, %v1294
  %v1296 = vpop.f32.mrb[0].mxu0
  %1297 = vdwg.mxu0
  %v1299 = vrot.slane %v1295, 4
  %v1301 = vadd.f32 %v1074, %v1299
  %v1302 = vxor.u32 %v1301, 2147483648
  %v1303 = vmul.f32 %v1302, 1.442695
  %v1304 = vpow.pop %v1303
  %v1305 = vadd.f32 %v1304, 1.0
  %v1306 = vrcp.pop %v1305
  %v1307 = vmul.f32 1.0, %v1306
  %v1308 = vadd.f32 %v1295, %v1197
  %v1310 = vrot.slane %v1308, 4
  %1311 = vrot.lane.b32.xlu0 %v1310, 64
  %v1312 = vpop.permute.xlu0 %1311
  %v1314 = vmul.f32 %v1307, %v1312
  %1316 = vrot.lane.b32.xlu0 %v1314, 64
  %v1317 = vpop.permute.xlu0 %1316
  %v1319 = vadd.f32 %v1074, %v1317
  %v1320 = vtanh.pop %v1319
  %v1321 = vsub.f32 1.0, %v1307
  %1323 = vrot.lane.b32.xlu0 %v1320, 96
  %v1324 = vpop.permute.xlu0 %1323
  %v1326 = vmul.f32 %v1321, %v1324
  %v1327 = vrot.slane %v1221, 6
  %v1329 = vmul.f32 %v1307, %v1327
  %v1330 = vadd.f32 %v1326, %v1329
  %v1332 = vrot.slane %v1330, 4
  %1333 = vrot.lane.b32.xlu0 %v1332, 96
  %v1334 = vpop.permute.xlu0 %1333
  %v1335 = vsel %vm104, %v1334, 0
  %1337 = vmatprep.subr.mxu0 0.0
  %1338 = vmatpush1.msra.mxu0 %v981
  %1339 = vmatprep.subr.mxu0 0.0
  %1340 = vmatpush1.msra.mxu0 %v982
  %1341 = vmatprep.subr.mxu0 0.0
  %1342 = vmatpush1.msra.mxu0 %v983
  %1343 = vmatprep.subr.mxu0 0.0
  %1344 = vmatpush1.msra.mxu0 %v984
  %1345 = vmatprep.subr.mxu0 0.0
  %1346 = vmatpush1.msra.mxu0 0.0
  %1347 = vmatprep.subr.mxu0 0.0
  %1348 = vmatpush1.msra.mxu0 0.0
  %1349 = vmatprep.subr.mxu0 0.0
  %1350 = vmatpush1.msra.mxu0 0.0
  %1351 = vmatprep.subr.mxu0 0.0
  %1352 = vmatpush1.msra.mxu0 0.0
  %1353 = vmatprep.subr.mxu0 0.0
  %1354 = vmatpush1.msra.mxu0 0.0
  %1355 = vmatprep.subr.mxu0 0.0
  %1356 = vmatpush1.msra.mxu0 0.0
  %1357 = vmatprep.subr.mxu0 0.0
  %1358 = vmatpush1.msra.mxu0 0.0
  %1359 = vmatprep.subr.mxu0 0.0
  %1360 = vmatpush1.msra.mxu0 0.0
  %1361 = vmatprep.subr.mxu0 0.0
  %1362 = vmatpush1.msra.mxu0 0.0
  %1363 = vmatprep.subr.mxu0 0.0
  %1364 = vmatpush1.msra.mxu0 0.0
  %1365 = vmatprep.subr.mxu0 0.0
  %1366 = vmatpush1.msra.mxu0 0.0
  %1367 = vmatprep.subr.mxu0 0.0
  %1368 = vmatpush1.msra.mxu0 0.0
  %1369 = vmatprep.subr.mxu0 0.0
  %1370 = vmatpush1.msra.mxu0 0.0
  %1371 = vmatprep.subr.mxu0 0.0
  %1372 = vmatpush1.msra.mxu0 0.0
  %1373 = vmatprep.subr.mxu0 0.0
  %1374 = vmatpush1.msra.mxu0 0.0
  %1375 = vmatprep.subr.mxu0 0.0
  %1376 = vmatpush1.msra.mxu0 0.0
  %1377 = vmatprep.subr.mxu0 0.0
  %1378 = vmatpush1.msra.mxu0 0.0
  %1379 = vmatprep.subr.mxu0 0.0
  %1380 = vmatpush1.msra.mxu0 0.0
  %1381 = vmatprep.subr.mxu0 0.0
  %1382 = vmatpush1.msra.mxu0 0.0
  %1383 = vmatprep.subr.mxu0 0.0
  %1384 = vmatpush1.msra.mxu0 0.0
  %1385 = vmatprep.subr.mxu0 0.0
  %1386 = vmatpush1.msra.mxu0 0.0
  %1387 = vmatprep.subr.mxu0 0.0
  %1388 = vmatpush1.msra.mxu0 0.0
  %1389 = vmatprep.subr.mxu0 0.0
  %1390 = vmatpush1.msra.mxu0 0.0
  %1391 = vmatprep.subr.mxu0 0.0
  %1392 = vmatpush1.msra.mxu0 0.0
  %1393 = vmatprep.subr.mxu0 0.0
  %1394 = vmatpush1.msra.mxu0 0.0
  %1395 = vmatprep.subr.mxu0 0.0
  %1396 = vmatpush1.msra.mxu0 0.0
  %1397 = vmatprep.subr.mxu0 0.0
  %1398 = vmatpush1.msra.mxu0 0.0
  %1399 = vmatprep.subr.mxu0 0.0
  %1400 = vmatpush1.msra.mxu0 0.0
  %1401 = vmatprep.mubr.f32.mxu0 0.0
  %1402 = vmatmul.mubr.f32.gmra.mrb[0].mxu0 %v1335
  %v1403 = vpop.f32.mrb[0].mxu0
  %v1404 = vadd.f32 0.0, %v1403
  %v1405 = vpop.f32.mrb[0].mxu0
  %1406 = vdwg.mxu0
  %v1408 = vrot.slane %v1404, 2
  %v1410 = vadd.f32 %v1074, %v1408
  %v1411 = vxor.u32 %v1410, 2147483648
  %v1412 = vmul.f32 %v1411, 1.442695
  %v1413 = vpow.pop %v1412
  %v1414 = vadd.f32 %v1413, 1.0
  %v1415 = vrcp.pop %v1414
  %v1416 = vmul.f32 1.0, %v1415
  %v1417 = vadd.f32 %v1404, %v1197
  %v1419 = vrot.slane %v1417, 2
  %1420 = vrot.lane.b32.xlu0 %v1419, 64
  %v1421 = vpop.permute.xlu0 %1420
  %v1423 = vmul.f32 %v1416, %v1421
  %1425 = vrot.lane.b32.xlu0 %v1423, 64
  %v1426 = vpop.permute.xlu0 %1425
  %v1428 = vadd.f32 %v1074, %v1426
  %v1429 = vtanh.pop %v1428
  %v1430 = vsub.f32 1.0, %v1416
  %1432 = vrot.lane.b32.xlu0 %v1429, 96
  %v1433 = vpop.permute.xlu0 %1432
  %v1435 = vmul.f32 %v1430, %v1433
  %v1436 = vrot.slane %v1330, 6
  %v1438 = vmul.f32 %v1416, %v1436
  %v1439 = vadd.f32 %v1435, %v1438
  %v1441 = vrot.slane %v1439, 6
  %1442 = vrot.lane.b32.xlu0 %v1441, 96
  %v1443 = vpop.permute.xlu0 %1442
  %v1444 = vsel %vm104, %v1443, 0
  %1446 = vmatprep.subr.mxu0 0.0
  %1447 = vmatpush1.msra.mxu0 %v981
  %1448 = vmatprep.subr.mxu0 0.0
  %1449 = vmatpush1.msra.mxu0 %v982
  %1450 = vmatprep.subr.mxu0 0.0
  %1451 = vmatpush1.msra.mxu0 %v983
  %1452 = vmatprep.subr.mxu0 0.0
  %1453 = vmatpush1.msra.mxu0 %v984
  %1454 = vmatprep.subr.mxu0 0.0
  %1455 = vmatpush1.msra.mxu0 0.0
  %1456 = vmatprep.subr.mxu0 0.0
  %1457 = vmatpush1.msra.mxu0 0.0
  %1458 = vmatprep.subr.mxu0 0.0
  %1459 = vmatpush1.msra.mxu0 0.0
  %1460 = vmatprep.subr.mxu0 0.0
  %1461 = vmatpush1.msra.mxu0 0.0
  %1462 = vmatprep.subr.mxu0 0.0
  %1463 = vmatpush1.msra.mxu0 0.0
  %1464 = vmatprep.subr.mxu0 0.0
  %1465 = vmatpush1.msra.mxu0 0.0
  %1466 = vmatprep.subr.mxu0 0.0
  %1467 = vmatpush1.msra.mxu0 0.0
  %1468 = vmatprep.subr.mxu0 0.0
  %1469 = vmatpush1.msra.mxu0 0.0
  %1470 = vmatprep.subr.mxu0 0.0
  %1471 = vmatpush1.msra.mxu0 0.0
  %1472 = vmatprep.subr.mxu0 0.0
  %1473 = vmatpush1.msra.mxu0 0.0
  %1474 = vmatprep.subr.mxu0 0.0
  %1475 = vmatpush1.msra.mxu0 0.0
  %1476 = vmatprep.subr.mxu0 0.0
  %1477 = vmatpush1.msra.mxu0 0.0
  %1478 = vmatprep.subr.mxu0 0.0
  %1479 = vmatpush1.msra.mxu0 0.0
  %1480 = vmatprep.subr.mxu0 0.0
  %1481 = vmatpush1.msra.mxu0 0.0
  %1482 = vmatprep.subr.mxu0 0.0
  %1483 = vmatpush1.msra.mxu0 0.0
  %1484 = vmatprep.subr.mxu0 0.0
  %1485 = vmatpush1.msra.mxu0 0.0
  %1486 = vmatprep.subr.mxu0 0.0
  %1487 = vmatpush1.msra.mxu0 0.0
  %1488 = vmatprep.subr.mxu0 0.0
  %1489 = vmatpush1.msra.mxu0 0.0
  %1490 = vmatprep.subr.mxu0 0.0
  %1491 = vmatpush1.msra.mxu0 0.0
  %1492 = vmatprep.subr.mxu0 0.0
  %1493 = vmatpush1.msra.mxu0 0.0
  %1494 = vmatprep.subr.mxu0 0.0
  %1495 = vmatpush1.msra.mxu0 0.0
  %1496 = vmatprep.subr.mxu0 0.0
  %1497 = vmatpush1.msra.mxu0 0.0
  %1498 = vmatprep.subr.mxu0 0.0
  %1499 = vmatpush1.msra.mxu0 0.0
  %1500 = vmatprep.subr.mxu0 0.0
  %1501 = vmatpush1.msra.mxu0 0.0
  %1502 = vmatprep.subr.mxu0 0.0
  %1503 = vmatpush1.msra.mxu0 0.0
  %1504 = vmatprep.subr.mxu0 0.0
  %1505 = vmatpush1.msra.mxu0 0.0
  %1506 = vmatprep.subr.mxu0 0.0
  %1507 = vmatpush1.msra.mxu0 0.0
  %1508 = vmatprep.subr.mxu0 0.0
  %1509 = vmatpush1.msra.mxu0 0.0
  %1510 = vmatprep.mubr.f32.mxu0 0.0
  %1511 = vmatmul.mubr.f32.gmra.mrb[0].mxu0 %v1444
  %v1512 = vpop.f32.mrb[0].mxu0
  %v1513 = vadd.f32 0.0, %v1512
  %v1514 = vpop.f32.mrb[0].mxu0
  %1515 = vdwg.mxu0
  %v1516 = vadd.f32 %v1079, %v1513
  %v1517 = vxor.u32 %v1516, 2147483648
  %v1518 = vmul.f32 %v1517, 1.442695
  %v1519 = vpow.pop %v1518
  %v1520 = vadd.f32 %v1519, 1.0
  %v1521 = vrcp.pop %v1520
  %v1522 = vmul.f32 1.0, %v1521
  %v1523 = vadd.f32 %v1513, %v1197
  %1525 = vrot.lane.b32.xlu0 %v1523, 64
  %v1526 = vpop.permute.xlu0 %1525
  %v1528 = vmul.f32 %v1522, %v1526
  %1530 = vrot.lane.b32.xlu0 %v1528, 64
  %v1531 = vpop.permute.xlu0 %1530
  %v1533 = vadd.f32 %v1079, %v1531
  %v1534 = vtanh.pop %v1533
  %v1535 = vsub.f32 1.0, %v1522
  %1537 = vrot.lane.b32.xlu0 %v1534, 96
  %v1538 = vpop.permute.xlu0 %1537
  %v1540 = vmul.f32 %v1535, %v1538
  %v1542 = vmul.f32 %v1522, %v1441
  %v1543 = vadd.f32 %v1540, %v1542
  %1545 = vrot.lane.b32.xlu0 %v1543, 96
  %v1546 = vpop.permute.xlu0 %1545
  %v1547 = vsel %vm104, %v1546, 0
  %1549 = vmatprep.subr.mxu0 0.0
  %1550 = vmatpush1.msra.mxu0 %v981
  %1551 = vmatprep.subr.mxu0 0.0
  %1552 = vmatpush1.msra.mxu0 %v982
  %1553 = vmatprep.subr.mxu0 0.0
  %1554 = vmatpush1.msra.mxu0 %v983
  %1555 = vmatprep.subr.mxu0 0.0
  %1556 = vmatpush1.msra.mxu0 %v984
  %1557 = vmatprep.subr.mxu0 0.0
  %1558 = vmatpush1.msra.mxu0 0.0
  %1559 = vmatprep.subr.mxu0 0.0
  %1560 = vmatpush1.msra.mxu0 0.0
  %1561 = vmatprep.subr.mxu0 0.0
  %1562 = vmatpush1.msra.mxu0 0.0
  %1563 = vmatprep.subr.mxu0 0.0
  %1564 = vmatpush1.msra.mxu0 0.0
  %1565 = vmatprep.subr.mxu0 0.0
  %1566 = vmatpush1.msra.mxu0 0.0
  %1567 = vmatprep.subr.mxu0 0.0
  %1568 = vmatpush1.msra.mxu0 0.0
  %1569 = vmatprep.subr.mxu0 0.0
  %1570 = vmatpush1.msra.mxu0 0.0
  %1571 = vmatprep.subr.mxu0 0.0
  %1572 = vmatpush1.msra.mxu0 0.0
  %1573 = vmatprep.subr.mxu0 0.0
  %1574 = vmatpush1.msra.mxu0 0.0
  %1575 = vmatprep.subr.mxu0 0.0
  %1576 = vmatpush1.msra.mxu0 0.0
  %1577 = vmatprep.subr.mxu0 0.0
  %1578 = vmatpush1.msra.mxu0 0.0
  %1579 = vmatprep.subr.mxu0 0.0
  %1580 = vmatpush1.msra.mxu0 0.0
  %1581 = vmatprep.subr.mxu0 0.0
  %1582 = vmatpush1.msra.mxu0 0.0
  %1583 = vmatprep.subr.mxu0 0.0
  %1584 = vmatpush1.msra.mxu0 0.0
  %1585 = vmatprep.subr.mxu0 0.0
  %1586 = vmatpush1.msra.mxu0 0.0
  %1587 = vmatprep.subr.mxu0 0.0
  %1588 = vmatpush1.msra.mxu0 0.0
  %1589 = vmatprep.subr.mxu0 0.0
  %1590 = vmatpush1.msra.mxu0 0.0
  %1591 = vmatprep.subr.mxu0 0.0
  %1592 = vmatpush1.msra.mxu0 0.0
  %1593 = vmatprep.subr.mxu0 0.0
  %1594 = vmatpush1.msra.mxu0 0.0
  %1595 = vmatprep.subr.mxu0 0.0
  %1596 = vmatpush1.msra.mxu0 0.0
  %1597 = vmatprep.subr.mxu0 0.0
  %1598 = vmatpush1.msra.mxu0 0.0
  %1599 = vmatprep.subr.mxu0 0.0
  %1600 = vmatpush1.msra.mxu0 0.0
  %1601 = vmatprep.subr.mxu0 0.0
  %1602 = vmatpush1.msra.mxu0 0.0
  %1603 = vmatprep.subr.mxu0 0.0
  %1604 = vmatpush1.msra.mxu0 0.0
  %1605 = vmatprep.subr.mxu0 0.0
  %1606 = vmatpush1.msra.mxu0 0.0
  %1607 = vmatprep.subr.mxu0 0.0
  %1608 = vmatpush1.msra.mxu0 0.0
  %1609 = vmatprep.subr.mxu0 0.0
  %1610 = vmatpush1.msra.mxu0 0.0
  %1611 = vmatprep.subr.mxu0 0.0
  %1612 = vmatpush1.msra.mxu0 0.0
  %1613 = vmatprep.mubr.f32.mxu0 0.0
  %1614 = vmatmul.mubr.f32.gmra.mrb[0].mxu0 %v1547
  %v1615 = vpop.f32.mrb[0].mxu0
  %v1616 = vadd.f32 0.0, %v1615
  %v1617 = vpop.f32.mrb[0].mxu0
  %1618 = vdwg.mxu0
  %v1620 = vrot.slane %v1616, 6
  %v1622 = vadd.f32 %v1079, %v1620
  %v1623 = vxor.u32 %v1622, 2147483648
  %v1624 = vmul.f32 %v1623, 1.442695
  %v1625 = vpow.pop %v1624
  %v1626 = vadd.f32 %v1625, 1.0
  %v1627 = vrcp.pop %v1626
  %v1628 = vmul.f32 1.0, %v1627
  %v1629 = vadd.f32 %v1616, %v1197
  %v1631 = vrot.slane %v1629, 6
  %1632 = vrot.lane.b32.xlu0 %v1631, 64
  %v1633 = vpop.permute.xlu0 %1632
  %v1635 = vmul.f32 %v1628, %v1633
  %1637 = vrot.lane.b32.xlu0 %v1635, 64
  %v1638 = vpop.permute.xlu0 %1637
  %v1640 = vadd.f32 %v1079, %v1638
  %v1641 = vtanh.pop %v1640
  %v1642 = vsub.f32 1.0, %v1628
  %1644 = vrot.lane.b32.xlu0 %v1641, 96
  %v1645 = vpop.permute.xlu0 %1644
  %v1647 = vmul.f32 %v1642, %v1645
  %v1648 = vrot.slane %v1543, 6
  %v1650 = vmul.f32 %v1628, %v1648
  %v1651 = vadd.f32 %v1647, %v1650
  %v1653 = vrot.slane %v1651, 2
  %1654 = vrot.lane.b32.xlu0 %v1653, 96
  %v1655 = vpop.permute.xlu0 %1654
  %v1656 = vsel %vm104, %v1655, 0
  %1658 = vmatprep.subr.mxu0 0.0
  %1659 = vmatpush1.msra.mxu0 %v981
  %1660 = vmatprep.subr.mxu0 0.0
  %1661 = vmatpush1.msra.mxu0 %v982
  %1662 = vmatprep.subr.mxu0 0.0
  %1663 = vmatpush1.msra.mxu0 %v983
  %1664 = vmatprep.subr.mxu0 0.0
  %1665 = vmatpush1.msra.mxu0 %v984
  %1666 = vmatprep.subr.mxu0 0.0
  %1667 = vmatpush1.msra.mxu0 0.0
  %1668 = vmatprep.subr.mxu0 0.0
  %1669 = vmatpush1.msra.mxu0 0.0
  %1670 = vmatprep.subr.mxu0 0.0
  %1671 = vmatpush1.msra.mxu0 0.0
  %1672 = vmatprep.subr.mxu0 0.0
  %1673 = vmatpush1.msra.mxu0 0.0
  %1674 = vmatprep.subr.mxu0 0.0
  %1675 = vmatpush1.msra.mxu0 0.0
  %1676 = vmatprep.subr.mxu0 0.0
  %1677 = vmatpush1.msra.mxu0 0.0
  %1678 = vmatprep.subr.mxu0 0.0
  %1679 = vmatpush1.msra.mxu0 0.0
  %1680 = vmatprep.subr.mxu0 0.0
  %1681 = vmatpush1.msra.mxu0 0.0
  %1682 = vmatprep.subr.mxu0 0.0
  %1683 = vmatpush1.msra.mxu0 0.0
  %1684 = vmatprep.subr.mxu0 0.0
  %1685 = vmatpush1.msra.mxu0 0.0
  %1686 = vmatprep.subr.mxu0 0.0
  %1687 = vmatpush1.msra.mxu0 0.0
  %1688 = vmatprep.subr.mxu0 0.0
  %1689 = vmatpush1.msra.mxu0 0.0
  %1690 = vmatprep.subr.mxu0 0.0
  %1691 = vmatpush1.msra.mxu0 0.0
  %1692 = vmatprep.subr.mxu0 0.0
  %1693 = vmatpush1.msra.mxu0 0.0
  %1694 = vmatprep.subr.mxu0 0.0
  %1695 = vmatpush1.msra.mxu0 0.0
  %1696 = vmatprep.subr.mxu0 0.0
  %1697 = vmatpush1.msra.mxu0 0.0
  %1698 = vmatprep.subr.mxu0 0.0
  %1699 = vmatpush1.msra.mxu0 0.0
  %1700 = vmatprep.subr.mxu0 0.0
  %1701 = vmatpush1.msra.mxu0 0.0
  %1702 = vmatprep.subr.mxu0 0.0
  %1703 = vmatpush1.msra.mxu0 0.0
  %1704 = vmatprep.subr.mxu0 0.0
  %1705 = vmatpush1.msra.mxu0 0.0
  %1706 = vmatprep.subr.mxu0 0.0
  %1707 = vmatpush1.msra.mxu0 0.0
  %1708 = vmatprep.subr.mxu0 0.0
  %1709 = vmatpush1.msra.mxu0 0.0
  %1710 = vmatprep.subr.mxu0 0.0
  %1711 = vmatpush1.msra.mxu0 0.0
  %1712 = vmatprep.subr.mxu0 0.0
  %1713 = vmatpush1.msra.mxu0 0.0
  %1714 = vmatprep.subr.mxu0 0.0
  %1715 = vmatpush1.msra.mxu0 0.0
  %1716 = vmatprep.subr.mxu0 0.0
  %1717 = vmatpush1.msra.mxu0 0.0
  %1718 = vmatprep.subr.mxu0 0.0
  %1719 = vmatpush1.msra.mxu0 0.0
  %1720 = vmatprep.subr.mxu0 0.0
  %1721 = vmatpush1.msra.mxu0 0.0
  %1722 = vmatprep.mubr.f32.mxu0 0.0
  %1723 = vmatmul.mubr.f32.gmra.mrb[0].mxu0 %v1656
  %v1724 = vpop.f32.mrb[0].mxu0
  %v1725 = vadd.f32 0.0, %v1724
  %v1726 = vpop.f32.mrb[0].mxu0
  %1727 = vdwg.mxu0
  %v1729 = vrot.slane %v1725, 4
  %v1731 = vadd.f32 %v1079, %v1729
  %v1732 = vxor.u32 %v1731, 2147483648
  %v1733 = vmul.f32 %v1732, 1.442695
  %v1734 = vpow.pop %v1733
  %v1735 = vadd.f32 %v1734, 1.0
  %v1736 = vrcp.pop %v1735
  %v1737 = vmul.f32 1.0, %v1736
  %v1738 = vadd.f32 %v1725, %v1197
  %v1740 = vrot.slane %v1738, 4
  %1741 = vrot.lane.b32.xlu0 %v1740, 64
  %v1742 = vpop.permute.xlu0 %1741
  %v1744 = vmul.f32 %v1737, %v1742
  %1746 = vrot.lane.b32.xlu0 %v1744, 64
  %v1747 = vpop.permute.xlu0 %1746
  %v1749 = vadd.f32 %v1079, %v1747
  %v1750 = vtanh.pop %v1749
  %v1751 = vsub.f32 1.0, %v1737
  %1753 = vrot.lane.b32.xlu0 %v1750, 96
  %v1754 = vpop.permute.xlu0 %1753
  %v1756 = vmul.f32 %v1751, %v1754
  %v1757 = vrot.slane %v1651, 6
  %v1759 = vmul.f32 %v1737, %v1757
  %v1760 = vadd.f32 %v1756, %v1759
  %v1762 = vrot.slane %v1760, 4
  %1763 = vrot.lane.b32.xlu0 %v1762, 96
  %v1764 = vpop.permute.xlu0 %1763
  %v1765 = vsel %vm104, %v1764, 0
  %1767 = vmatprep.subr.mxu0 0.0
  %1768 = vmatpush1.msra.mxu0 %v981
  %1769 = vmatprep.subr.mxu0 0.0
  %1770 = vmatpush1.msra.mxu0 %v982
  %1771 = vmatprep.subr.mxu0 0.0
  %1772 = vmatpush1.msra.mxu0 %v983
  %1773 = vmatprep.subr.mxu0 0.0
  %1774 = vmatpush1.msra.mxu0 %v984
  %1775 = vmatprep.subr.mxu0 0.0
  %1776 = vmatpush1.msra.mxu0 0.0
  %1777 = vmatprep.subr.mxu0 0.0
  %1778 = vmatpush1.msra.mxu0 0.0
  %1779 = vmatprep.subr.mxu0 0.0
  %1780 = vmatpush1.msra.mxu0 0.0
  %1781 = vmatprep.subr.mxu0 0.0
  %1782 = vmatpush1.msra.mxu0 0.0
  %1783 = vmatprep.subr.mxu0 0.0
  %1784 = vmatpush1.msra.mxu0 0.0
  %1785 = vmatprep.subr.mxu0 0.0
  %1786 = vmatpush1.msra.mxu0 0.0
  %1787 = vmatprep.subr.mxu0 0.0
  %1788 = vmatpush1.msra.mxu0 0.0
  %1789 = vmatprep.subr.mxu0 0.0
  %1790 = vmatpush1.msra.mxu0 0.0
  %1791 = vmatprep.subr.mxu0 0.0
  %1792 = vmatpush1.msra.mxu0 0.0
  %1793 = vmatprep.subr.mxu0 0.0
  %1794 = vmatpush1.msra.mxu0 0.0
  %1795 = vmatprep.subr.mxu0 0.0
  %1796 = vmatpush1.msra.mxu0 0.0
  %1797 = vmatprep.subr.mxu0 0.0
  %1798 = vmatpush1.msra.mxu0 0.0
  %1799 = vmatprep.subr.mxu0 0.0
  %1800 = vmatpush1.msra.mxu0 0.0
  %1801 = vmatprep.subr.mxu0 0.0
  %1802 = vmatpush1.msra.mxu0 0.0
  %1803 = vmatprep.subr.mxu0 0.0
  %1804 = vmatpush1.msra.mxu0 0.0
  %1805 = vmatprep.subr.mxu0 0.0
  %1806 = vmatpush1.msra.mxu0 0.0
  %1807 = vmatprep.subr.mxu0 0.0
  %1808 = vmatpush1.msra.mxu0 0.0
  %1809 = vmatprep.subr.mxu0 0.0
  %1810 = vmatpush1.msra.mxu0 0.0
  %1811 = vmatprep.subr.mxu0 0.0
  %1812 = vmatpush1.msra.mxu0 0.0
  %1813 = vmatprep.subr.mxu0 0.0
  %1814 = vmatpush1.msra.mxu0 0.0
  %1815 = vmatprep.subr.mxu0 0.0
  %1816 = vmatpush1.msra.mxu0 0.0
  %1817 = vmatprep.subr.mxu0 0.0
  %1818 = vmatpush1.msra.mxu0 0.0
  %1819 = vmatprep.subr.mxu0 0.0
  %1820 = vmatpush1.msra.mxu0 0.0
  %1821 = vmatprep.subr.mxu0 0.0
  %1822 = vmatpush1.msra.mxu0 0.0
  %1823 = vmatprep.subr.mxu0 0.0
  %1824 = vmatpush1.msra.mxu0 0.0
  %1825 = vmatprep.subr.mxu0 0.0
  %1826 = vmatpush1.msra.mxu0 0.0
  %1827 = vmatprep.subr.mxu0 0.0
  %1828 = vmatpush1.msra.mxu0 0.0
  %1829 = vmatprep.subr.mxu0 0.0
  %1830 = vmatpush1.msra.mxu0 0.0
  %1831 = vmatprep.mubr.f32.mxu0 0.0
  %1832 = vmatmul.mubr.f32.gmra.mrb[0].mxu0 %v1765
  %v1833 = vpop.f32.mrb[0].mxu0
  %v1834 = vadd.f32 0.0, %v1833
  %v1835 = vpop.f32.mrb[0].mxu0
  %1836 = vdwg.mxu0
  %v1838 = vrot.slane %v1834, 2
  %v1840 = vadd.f32 %v1079, %v1838
  %v1841 = vxor.u32 %v1840, 2147483648
  %v1842 = vmul.f32 %v1841, 1.442695
  %v1843 = vpow.pop %v1842
  %v1844 = vadd.f32 %v1843, 1.0
  %v1845 = vrcp.pop %v1844
  %v1846 = vmul.f32 1.0, %v1845
  %v1847 = vadd.f32 %v1834, %v1197
  %v1849 = vrot.slane %v1847, 2
  %1850 = vrot.lane.b32.xlu0 %v1849, 64
  %v1851 = vpop.permute.xlu0 %1850
  %v1853 = vmul.f32 %v1846, %v1851
  %1855 = vrot.lane.b32.xlu0 %v1853, 64
  %v1856 = vpop.permute.xlu0 %1855
  %v1858 = vadd.f32 %v1079, %v1856
  %v1859 = vtanh.pop %v1858
  %v1860 = vsub.f32 1.0, %v1846
  %1862 = vrot.lane.b32.xlu0 %v1859, 96
  %v1863 = vpop.permute.xlu0 %1862
  %v1865 = vmul.f32 %v1860, %v1863
  %v1866 = vrot.slane %v1760, 6
  %v1868 = vmul.f32 %v1846, %v1866
  %v1869 = vadd.f32 %v1865, %v1868
  %v1870 = vsel %vm972, %v1110, %v1221
  %v1871 = vsel %vm974, %v1870, %v1330
  %v1872 = vsel %vm976, %v1871, %v1439
  %v1873 = vsel %vm972, %v1543, %v1651
  %v1874 = vsel %vm974, %v1873, %v1760
  %v1875 = vsel %vm976, %v1874, %v1869
  %v1876 = vld [vmem:[%s9] sm:$0xff]
  %v1877 = vld [vmem:[%s9 + $0x8] sm:$0xff]
  %v1878 = vld [vmem:[%s9 + $0x10] sm:$0xff]
  %v1879 = vld [vmem:[%s9 + $0x18] sm:$0xff]
  %v1880 = vld [vmem:[%s10] sm:$0x1]
  %v1882 = vlaneseq
  %v1883 = vshrl.u32 %v1882, 7
  %v1884 = vsub.s32 0, %v1883
  %v1885 = vrot.slane %v1880, %v1884
  %1889 = vrot.lane.b32.xlu0 %v1872, 96
  %v1890 = vpop.permute.xlu0 %1889
  %1891 = vrot.lane.b32.xlu0 %v1875, 96
  %v1892 = vpop.permute.xlu0 %1891
  %v1893 = vsel %vm104, %v1890, 0
  %v1895 = vsel %vm104, %v1892, 0
  %1897 = vmatprep.subr.mxu0 0.0
  %1898 = vmatpush1.msra.mxu0 %v1876
  %1899 = vmatprep.subr.mxu0 0.0
  %1900 = vmatpush1.msra.mxu0 %v1877
  %1901 = vmatprep.subr.mxu0 0.0
  %1902 = vmatpush1.msra.mxu0 %v1878
  %1903 = vmatprep.subr.mxu0 0.0
  %1904 = vmatpush1.msra.mxu0 %v1879
  %1905 = vmatprep.subr.mxu0 0.0
  %1906 = vmatpush1.msra.mxu0 0.0
  %1907 = vmatprep.subr.mxu0 0.0
  %1908 = vmatpush1.msra.mxu0 0.0
  %1909 = vmatprep.subr.mxu0 0.0
  %1910 = vmatpush1.msra.mxu0 0.0
  %1911 = vmatprep.subr.mxu0 0.0
  %1912 = vmatpush1.msra.mxu0 0.0
  %1913 = vmatprep.subr.mxu0 0.0
  %1914 = vmatpush1.msra.mxu0 0.0
  %1915 = vmatprep.subr.mxu0 0.0
  %1916 = vmatpush1.msra.mxu0 0.0
  %1917 = vmatprep.subr.mxu0 0.0
  %1918 = vmatpush1.msra.mxu0 0.0
  %1919 = vmatprep.subr.mxu0 0.0
  %1920 = vmatpush1.msra.mxu0 0.0
  %1921 = vmatprep.subr.mxu0 0.0
  %1922 = vmatpush1.msra.mxu0 0.0
  %1923 = vmatprep.subr.mxu0 0.0
  %1924 = vmatpush1.msra.mxu0 0.0
  %1925 = vmatprep.subr.mxu0 0.0
  %1926 = vmatpush1.msra.mxu0 0.0
  %1927 = vmatprep.subr.mxu0 0.0
  %1928 = vmatpush1.msra.mxu0 0.0
  %1929 = vmatprep.subr.mxu0 0.0
  %1930 = vmatpush1.msra.mxu0 0.0
  %1931 = vmatprep.subr.mxu0 0.0
  %1932 = vmatpush1.msra.mxu0 0.0
  %1933 = vmatprep.subr.mxu0 0.0
  %1934 = vmatpush1.msra.mxu0 0.0
  %1935 = vmatprep.subr.mxu0 0.0
  %1936 = vmatpush1.msra.mxu0 0.0
  %1937 = vmatprep.subr.mxu0 0.0
  %1938 = vmatpush1.msra.mxu0 0.0
  %1939 = vmatprep.subr.mxu0 0.0
  %1940 = vmatpush1.msra.mxu0 0.0
  %1941 = vmatprep.subr.mxu0 0.0
  %1942 = vmatpush1.msra.mxu0 0.0
  %1943 = vmatprep.subr.mxu0 0.0
  %1944 = vmatpush1.msra.mxu0 0.0
  %1945 = vmatprep.subr.mxu0 0.0
  %1946 = vmatpush1.msra.mxu0 0.0
  %1947 = vmatprep.subr.mxu0 0.0
  %1948 = vmatpush1.msra.mxu0 0.0
  %1949 = vmatprep.subr.mxu0 0.0
  %1950 = vmatpush1.msra.mxu0 0.0
  %1951 = vmatprep.subr.mxu0 0.0
  %1952 = vmatpush1.msra.mxu0 0.0
  %1953 = vmatprep.subr.mxu0 0.0
  %1954 = vmatpush1.msra.mxu0 0.0
  %1955 = vmatprep.subr.mxu0 0.0
  %1956 = vmatpush1.msra.mxu0 0.0
  %1957 = vmatprep.subr.mxu0 0.0
  %1958 = vmatpush1.msra.mxu0 0.0
  %1959 = vmatprep.subr.mxu0 0.0
  %1960 = vmatpush1.msra.mxu0 0.0
  %1961 = vmatprep.mubr.f32.mxu0 0.0
  %1962 = vmatmul.mubr.f32.gmra.mrb[0].mxu0 %v1893
  %v1963 = vpop.f32.mrb[0].mxu0
  %v1964 = vadd.f32 %v1885, %v1963
  %v1965 = vpop.f32.mrb[0].mxu0
  %1966 = vmatprep.mubr.f32.mxu0 0.0
  %1967 = vmatmul.mubr.f32.gmra.mrb[0].mxu0 %v1895
  %v1968 = vpop.f32.mrb[0].mxu0
  %v1969 = vadd.f32 %v1885, %v1968
  %v1970 = vpop.f32.mrb[0].mxu0
  %1971 = vdwg.mxu0
  %vm1972 = vcmask 326656
  %v1973 = vsel %vm1972, %v1964, -inf
  %1974 = vmax.xlane.f32.xlu0 %v1973
  %v1975 = vpop.xlane.xlu0 %1974
  %v1976 = vsel %vm1972, %v1969, -inf
  %1977 = vmax.xlane.f32.xlu0 %v1976
  %v1978 = vpop.xlane.xlu0 %1977
  %v1979 = vsub.f32 %v1964, %v1975
  %v1980 = vsub.f32 %v1969, %v1978
  %v1981 = vmul.f32 %v1979, 1.442695
  %v1982 = vpow.pop %v1981
  %v1983 = vmul.f32 %v1980, 1.442695
  %v1984 = vpow.pop %v1983
  %v1985 = vsel %vm1972, %v1982, 0.0
  %1986 = vadd.xlane.f32.xlu0 %v1985
  %v1987 = vpop.xlane.xlu0 %1986
  %v1988 = vsel %vm1972, %v1984, 0.0
  %1989 = vadd.xlane.f32.xlu0 %v1988
  %v1990 = vpop.xlane.xlu0 %1989
  %v1991 = vrcp.pop %v1987
  %v1992 = vmul.f32 %v1982, %v1991
  %v1993 = vrcp.pop %v1990
  %v1994 = vmul.f32 %v1984, %v1993
  %v1997 = vcombine.high %v1992, %v1992
  %v1999 = vunpack.c.l.s4 1983009808
  %v2000 = vunpack.c.0.s8 %v1999
  %v2001 = vlaneseq
  %v2002 = vshrl.u32 %v2001, 7
  %v2003 = vsub.s32 %v2000, %v2002
  %v2004 = vrot.slane %v1992, %v2003
  %v2006 = vunpack.c.l.s4 1983009808
  %v2007 = vunpack.c.0.s8 %v2006
  %v2008 = vlaneseq
  %v2009 = vshrl.u32 %v2008, 7
  %v2010 = vsub.s32 %v2007, %v2009
  %v2011 = vrot.slane %v1997, %v2010
  %v2012 = vcombine.high %v2004, %v2004
  %v2013 = vcombine.high %v2011, %v2011
  %v2014 = vcombine.high %v1994, %v1994
  %v2016 = vunpack.c.l.s4 1983009808
  %v2017 = vunpack.c.0.s8 %v2016
  %v2018 = vlaneseq
  %v2019 = vshrl.u32 %v2018, 7
  %v2020 = vsub.s32 %v2017, %v2019
  %v2021 = vrot.slane %v1994, %v2020
  %v2023 = vunpack.c.l.s4 1983009808
  %v2024 = vunpack.c.0.s8 %v2023
  %v2025 = vlaneseq
  %v2026 = vshrl.u32 %v2025, 7
  %v2027 = vsub.s32 %v2024, %v2026
  %v2028 = vrot.slane %v2014, %v2027
  %v2029 = vcombine.high %v2021, %v2021
  %v2030 = vcombine.high %v2028, %v2028
  %vm2039 = vcmask 320512
  %2040 = vst.msk [vmem:[%s11] sm:$0x3] %vm2039, %v2004
  %2041 = vst.msk [vmem:[%s11 + $0x2] sm:$0x3] %vm2039, %v2012
  %2042 = vst.msk [vmem:[%s11 + $0x4] sm:$0x3] %vm2039, %v2011
  %2043 = vst.msk [vmem:[%s11 + $0x6] sm:$0x3] %vm2039, %v2013
  %2044 = vst.msk [vmem:[%s11 + $0x8] sm:$0x3] %vm2039, %v2021
  %2045 = vst.msk [vmem:[%s11 + $0xa] sm:$0x3] %vm2039, %v2029
  %2046 = vst.msk [vmem:[%s11 + $0xc] sm:$0x3] %vm2039, %v2028
  %2047 = vst.msk [vmem:[%s11 + $0xe] sm:$0x3] %vm2039, %v2030
  // Predicated region
  $region46: #{measure_gpt_forward.1} parent=0 // pred_check
    _
  $region47: #{measure_gpt_forward.1} parent=0 // pred_check_branch
    %2049 = sbr.rel (0) target = $region49
  $region48: #{measure_gpt_forward.1} parent=0 // pred_region
    _
  $region49: #{measure_gpt_forward.1} parent=0 // pred_fallthru
    _
  // Predicated region
  $region50: #{measure_gpt_forward.1} parent=0 // pred_check
    _
  $region51: #{measure_gpt_forward.1} parent=0 // pred_check_branch
    %2051 = sbr.rel (0) target = $region53
  $region52: #{measure_gpt_forward.1} parent=0 // pred_region
    _
  $region53: #{measure_gpt_forward.1} parent=0 // pred_fallthru
    _

</llo_original>
